<compile_context>
chip_gen: v7x
topology: tpu7x:2x2x1
jax: 0.10.0
libtpu: 0.0.40
codegen_flags: <defaults>
</compile_context>

<pallas_src>
import functools
import math

import jax
import jax.numpy as jnp
from jax import lax
from jax.experimental import pallas as pl
from jax.experimental.pallas import tpu as pltpu


def _layer_norm(x, gamma, beta, eps=1e-5):
    mean = jnp.mean(x, axis=-1, keepdims=True)
    var = jnp.mean(jnp.square(x - mean), axis=-1, keepdims=True)
    return (x - mean) * lax.rsqrt(var + eps) * gamma + beta


def state_mapper_kernel(num_heads,
                        x_ref, w_in_ref, w_qkv_ref, w_oh_ref,
                        w_f1_ref, w_f2_ref, w_p1_ref, w_p2_ref,
                        vecs_ref, b_qkv_ref, b_f1_ref, b_p2_ref,
                        out_ref):
    H = w_in_ref.shape[1]
    hd = H // num_heads
    S = x_ref.shape[1]

    # Stacked width-H per-feature vectors (sublane slices only).
    b_in = vecs_ref[0:1, :]
    b_o = vecs_ref[1:2, :]
    g1 = vecs_ref[2:3, :]
    be1 = vecs_ref[3:4, :]
    b_f2 = vecs_ref[4:5, :]
    g2 = vecs_ref[5:6, :]
    be2 = vecs_ref[6:7, :]
    b_p1 = vecs_ref[7:8, :]

    def mm(a_f32, w_ref):
        # bf16 MXU matmul, f32 accumulation (weights are pre-cast to bf16).
        return jnp.dot(a_f32.astype(jnp.bfloat16), w_ref[...],
                       preferred_element_type=jnp.float32)

    x_in = x_ref[0]                                   # (S, source_dim) f32

    # --- input_proj ----------------------------------------------------------
    x = mm(x_in, w_in_ref) + b_in                     # (S, H) f32

    # --- fused QKV projection (Q scale pre-folded into w_qkv / b_qkv) --------
    qkv = mm(x, w_qkv_ref) + b_qkv_ref[...]           # (S, 3H) f32

    # --- multi-head self-attention -------------------------------------------
    # Per-head static column slices; the output projection is folded into the
    # head loop (sum_h ctx_h @ w_o[h*hd:(h+1)*hd, :] == concat(ctx) @ w_o), so
    # no reshape / transpose / concat is ever materialized.
    attn = jnp.zeros((S, H), jnp.float32)
    for h in range(num_heads):
        q = qkv[:, h * hd:(h + 1) * hd]               # (S, hd), already scaled
        k = qkv[:, H + h * hd:H + (h + 1) * hd]
        v = qkv[:, 2 * H + h * hd:2 * H + (h + 1) * hd]
        s = lax.dot_general(q, k, (((1,), (1,)), ((), ())),
                            preferred_element_type=jnp.float32)   # (S, S)
        s = s - jnp.max(s, axis=-1, keepdims=True)
        p = jnp.exp(s)
        p = p / jnp.sum(p, axis=-1, keepdims=True)    # exact softmax normalize
        ctx = jnp.dot(p, v, preferred_element_type=jnp.float32)   # (S, hd)
        attn = attn + jnp.dot(ctx.astype(jnp.bfloat16), w_oh_ref[h],
                              preferred_element_type=jnp.float32)
    attn = attn + b_o

    # --- residual + norm1 -----------------------------------------------------
    x = _layer_norm(x + attn, g1, be1)

    # --- FFN (H -> 4H -> H) ---------------------------------------------------
    ffn = jnp.maximum(mm(x, w_f1_ref) + b_f1_ref[...], 0.0)
    ffn = mm(ffn, w_f2_ref) + b_f2

    # --- residual + norm2 -----------------------------------------------------
    x = _layer_norm(x + ffn, g2, be2)

    # --- output_proj (H -> H -> target, padded to 128 lanes, lane-dense store) -
    h1 = jnp.maximum(mm(x, w_p1_ref) + b_p1, 0.0)
    out = mm(h1, w_p2_ref) + b_p2_ref[...]

    out_ref[0] = out.astype(out_ref.dtype)


def make_params(key, source_dim, target_dim, hidden_dim):
    """Deterministic synthetic parameters (same math as the PyTorch module)."""
    ks = jax.random.split(key, 8)

    def lin(k, din, dout):
        kw, kb = jax.random.split(k)
        w = jax.random.normal(kw, (din, dout), jnp.float32) * (1.0 / jnp.sqrt(din))
        b = jax.random.normal(kb, (1, dout), jnp.float32) * 0.02
        return w, b

    p = {}
    p["w_in"], p["b_in"] = lin(ks[0], source_dim, hidden_dim)
    p["w_qkv"], p["b_qkv"] = lin(ks[1], hidden_dim, 3 * hidden_dim)   # fused Q/K/V
    p["w_o"], p["b_o"] = lin(ks[2], hidden_dim, hidden_dim)
    p["g1"] = jnp.ones((1, hidden_dim), jnp.float32)
    p["be1"] = jnp.zeros((1, hidden_dim), jnp.float32)
    p["w_f1"], p["b_f1"] = lin(ks[3], hidden_dim, hidden_dim * 4)
    p["w_f2"], p["b_f2"] = lin(ks[4], hidden_dim * 4, hidden_dim)
    p["g2"] = jnp.ones((1, hidden_dim), jnp.float32)
    p["be2"] = jnp.zeros((1, hidden_dim), jnp.float32)
    p["w_p1"], p["b_p1"] = lin(ks[5], hidden_dim, hidden_dim)
    p["w_p2"], p["b_p2"] = lin(ks[6], hidden_dim, target_dim)
    return p


_VEC_ORDER = ("b_in", "b_o", "g1", "be1", "b_f2", "g2", "be2", "b_p1")


def state_mapper_forward(states, params, num_heads, target_dim):
    squeeze_output = states.ndim == 2
    if squeeze_output:
        states = states[None]
    B, S, src = states.shape
    H = params["w_in"].shape[1]
    assert H % num_heads == 0, "hidden_dim must be divisible by num_heads"
    hd = H // num_heads
    ffn_dim = params["w_f1"].shape[1]

    # Lane-dense output width (multiple of 128), sliced back after the kernel.
    out_pad = max(128, ((target_dim + 127) // 128) * 128)

    # --- one-time parameter transforms (amortized across calls) --------------
    scale = 1.0 / math.sqrt(hd)
    w_qkv = params["w_qkv"].at[:, :H].multiply(scale)      # fold 1/sqrt(hd) into Q
    b_qkv = params["b_qkv"].at[:, :H].multiply(scale)
    w_oh = params["w_o"].reshape(num_heads, hd, H)          # per-head out-proj rows
    w_p2 = jnp.pad(params["w_p2"], ((0, 0), (0, out_pad - target_dim)))
    b_p2 = jnp.pad(params["b_p2"], ((0, 0), (0, out_pad - target_dim)))

    def bf16(a):
        return a.astype(jnp.bfloat16)

    w_in = bf16(params["w_in"])
    w_f1 = bf16(params["w_f1"])
    w_f2 = bf16(params["w_f2"])
    w_p1 = bf16(params["w_p1"])
    w_qkv = bf16(w_qkv)
    w_oh = bf16(w_oh)
    w_p2 = bf16(w_p2)

    # Width-H per-feature vectors stacked -> one (8, H) f32 operand.
    vecs = jnp.concatenate([params[k] for k in _VEC_ORDER], axis=0).astype(jnp.float32)
    b_f1 = params["b_f1"].astype(jnp.float32)

    x = states.astype(jnp.float32)

    kernel = functools.partial(state_mapper_kernel, num_heads)

    def const_spec(shape):
        return pl.BlockSpec(shape, lambda b, _s=shape: (0,) * len(_s))

    grid_spec = pltpu.PrefetchScalarGridSpec(
        num_scalar_prefetch=0,
        grid=(B,),
        in_specs=[
            pl.BlockSpec((1, S, src), lambda b: (b, 0, 0)),      # x: streams per step
            const_spec(w_in.shape), const_spec(w_qkv.shape), const_spec(w_oh.shape),
            const_spec(w_f1.shape), const_spec(w_f2.shape),
            const_spec(w_p1.shape), const_spec(w_p2.shape),
            const_spec(vecs.shape), const_spec(b_qkv.shape),
            const_spec(b_f1.shape), const_spec(b_p2.shape),
        ],
        out_specs=pl.BlockSpec((1, S, out_pad), lambda b: (b, 0, 0)),
    )

    # Advisory cost estimate for XLA's scheduler.
    nh = num_heads
    flops = 2 * B * S * (src * H + H * 3 * H + H * H + H * ffn_dim + ffn_dim * H
                         + H * H + H * out_pad) + 4 * B * nh * S * S * hd
    bytes_accessed = (x.size * 4 + B * S * out_pad * 4
                      + 2 * (w_in.size + w_qkv.size + w_oh.size + w_f1.size
                             + w_f2.size + w_p1.size + w_p2.size)
                      + 4 * (vecs.size + b_qkv.size + b_f1.size + b_p2.size))
    cost = pl.CostEstimate(flops=int(flops),
                           transcendentals=int(B * nh * S * S),
                           bytes_accessed=int(bytes_accessed))

    out = pl.pallas_call(
        kernel,
        out_shape=jax.ShapeDtypeStruct((B, S, out_pad), jnp.float32),
        grid_spec=grid_spec,
        compiler_params=pltpu.CompilerParams(dimension_semantics=("parallel",)),
        cost_estimate=cost,
    )(x, w_in, w_qkv, w_oh, w_f1, w_f2, w_p1, w_p2, vecs, b_qkv, b_f1, b_p2)

    out = out[:, :, :target_dim]
    if squeeze_output:
        out = out[0]
    return out


def state_mapper_reference(states, params, num_heads):
    """Pure-JAX f32 reference (module semantics) for correctness checking."""
    if states.ndim == 2:
        states = states[None]
        squeeze = True
    else:
        squeeze = False
    p = params
    x = states @ p["w_in"] + p["b_in"]
    B, S, H = x.shape
    hd = H // num_heads
    qkv = x @ p["w_qkv"] + p["b_qkv"]
    q, k, v = jnp.split(qkv, 3, axis=-1)

    def heads(t):
        return t.reshape(B, S, num_heads, hd).transpose(0, 2, 1, 3)

    q, k, v = heads(q), heads(k), heads(v)
    scores = jnp.einsum("bhqd,bhkd->bhqk", q, k) / jnp.sqrt(hd)
    attn = jax.nn.softmax(scores, axis=-1)
    ctx = jnp.einsum("bhqk,bhkd->bhqd", attn, v).transpose(0, 2, 1, 3).reshape(B, S, H)
    ctx = ctx @ p["w_o"] + p["b_o"]

    def ln(x, g, b, eps=1e-5):
        m = x.mean(-1, keepdims=True)
        var = ((x - m) ** 2).mean(-1, keepdims=True)
        return (x - m) / jnp.sqrt(var + eps) * g + b

    x = ln(x + ctx, p["g1"], p["be1"])
    ffn = jnp.maximum(x @ p["w_f1"] + p["b_f1"], 0.0) @ p["w_f2"] + p["b_f2"]
    x = ln(x + ffn, p["g2"], p["be2"])
    out = jnp.maximum(x @ p["w_p1"] + p["b_p1"], 0.0) @ p["w_p2"] + p["b_p2"]
    if squeeze:
        out = out[0]
    return out


if __name__ == "__main__":
    # Small shapes consistent with the module's forward.
    batch, num_states = 2, 8
    source_dim, hidden_dim, target_dim, num_heads = 16, 32, 8, 4

    key = jax.random.PRNGKey(0)
    k_x, k_p = jax.random.split(key)
    states = jax.random.normal(k_x, (batch, num_states, source_dim), jnp.float32)
    params = make_params(k_p, source_dim, target_dim, hidden_dim)

    out = state_mapper_forward(states, params, num_heads, target_dim)
    out = jax.block_until_ready(out)

    ref = state_mapper_reference(states, params, num_heads)
    assert out.shape == (batch, num_states, target_dim)
    max_err = float(jnp.max(jnp.abs(out - ref)))
    # bf16 MXU matmuls with f32 accumulation -> worst-case ~1e-2 deviation budget
    # vs. the pure-f32 reference (LayerNorm / softmax are kept in f32).
    assert jnp.allclose(out, ref, atol=3e-2, rtol=3e-2), f"mismatch: max|err|={max_err}"

    print("KERNEL_OK")
</pallas_src>

<mosaic_0001>
module attributes {stable_mosaic.version = 11 : i64} {
  func.func @state_mapper_kernel(%arg0: i32, %arg1: memref<1x8x16xf32, #tpu.memory_space<vmem>>, %arg2: memref<16x32xbf16, #tpu.memory_space<vmem>>, %arg3: memref<32x96xbf16, #tpu.memory_space<vmem>>, %arg4: memref<4x8x32xbf16, #tpu.memory_space<vmem>>, %arg5: memref<32x128xbf16, #tpu.memory_space<vmem>>, %arg6: memref<128x32xbf16, #tpu.memory_space<vmem>>, %arg7: memref<32x32xbf16, #tpu.memory_space<vmem>>, %arg8: memref<32x128xbf16, #tpu.memory_space<vmem>>, %arg9: memref<8x32xf32, #tpu.memory_space<vmem>>, %arg10: memref<1x96xf32, #tpu.memory_space<vmem>>, %arg11: memref<1x128xf32, #tpu.memory_space<vmem>>, %arg12: memref<1x128xf32, #tpu.memory_space<vmem>>, %arg13: memref<1x8x128xf32, #tpu.memory_space<vmem>>) attributes {dimension_semantics = [#tpu.dimension_semantics<parallel>], iteration_bounds = array<i64: 2>, scalar_prefetch = 0 : i64, scratch_operands = 0 : i64, tpu.core_type = #tpu.core_type<tc>, window_params = [{transform_indices = @transform_0, window_bounds = array<i64: 1, 8, 16>}, {pipeline_mode = #tpu.pipeline_mode<synchronous>, transform_indices = @transform_1, window_bounds = array<i64: 16, 32>}, {pipeline_mode = #tpu.pipeline_mode<synchronous>, transform_indices = @transform_2, window_bounds = array<i64: 32, 96>}, {pipeline_mode = #tpu.pipeline_mode<synchronous>, transform_indices = @transform_3, window_bounds = array<i64: 4, 8, 32>}, {pipeline_mode = #tpu.pipeline_mode<synchronous>, transform_indices = @transform_4, window_bounds = array<i64: 32, 128>}, {pipeline_mode = #tpu.pipeline_mode<synchronous>, transform_indices = @transform_5, window_bounds = array<i64: 128, 32>}, {pipeline_mode = #tpu.pipeline_mode<synchronous>, transform_indices = @transform_6, window_bounds = array<i64: 32, 32>}, {pipeline_mode = #tpu.pipeline_mode<synchronous>, transform_indices = @transform_7, window_bounds = array<i64: 32, 128>}, {pipeline_mode = #tpu.pipeline_mode<synchronous>, transform_indices = @transform_8, window_bounds = array<i64: 8, 32>}, {pipeline_mode = #tpu.pipeline_mode<synchronous>, transform_indices = @transform_9, window_bounds = array<i64: 1, 96>}, {pipeline_mode = #tpu.pipeline_mode<synchronous>, transform_indices = @transform_10, window_bounds = array<i64: 1, 128>}, {pipeline_mode = #tpu.pipeline_mode<synchronous>, transform_indices = @transform_11, window_bounds = array<i64: 1, 128>}, {transform_indices = @transform_12, window_bounds = array<i64: 1, 8, 128>}]} {
    %c0 = arith.constant 0 : index
    %c0_0 = arith.constant 0 : index
    %0 = vector.load %arg9[%c0, %c0_0] : memref<8x32xf32, #tpu.memory_space<vmem>>, vector<1x32xf32>
    %c1 = arith.constant 1 : index
    %c0_1 = arith.constant 0 : index
    %1 = vector.load %arg9[%c1, %c0_1] : memref<8x32xf32, #tpu.memory_space<vmem>>, vector<1x32xf32>
    %c2 = arith.constant 2 : index
    %c0_2 = arith.constant 0 : index
    %2 = vector.load %arg9[%c2, %c0_2] : memref<8x32xf32, #tpu.memory_space<vmem>>, vector<1x32xf32>
    %c3 = arith.constant 3 : index
    %c0_3 = arith.constant 0 : index
    %3 = vector.load %arg9[%c3, %c0_3] : memref<8x32xf32, #tpu.memory_space<vmem>>, vector<1x32xf32>
    %c4 = arith.constant 4 : index
    %c0_4 = arith.constant 0 : index
    %4 = vector.load %arg9[%c4, %c0_4] : memref<8x32xf32, #tpu.memory_space<vmem>>, vector<1x32xf32>
    %c5 = arith.constant 5 : index
    %c0_5 = arith.constant 0 : index
    %5 = vector.load %arg9[%c5, %c0_5] : memref<8x32xf32, #tpu.memory_space<vmem>>, vector<1x32xf32>
    %c6 = arith.constant 6 : index
    %c0_6 = arith.constant 0 : index
    %6 = vector.load %arg9[%c6, %c0_6] : memref<8x32xf32, #tpu.memory_space<vmem>>, vector<1x32xf32>
    %c7 = arith.constant 7 : index
    %c0_7 = arith.constant 0 : index
    %7 = vector.load %arg9[%c7, %c0_7] : memref<8x32xf32, #tpu.memory_space<vmem>>, vector<1x32xf32>
    %c0_8 = arith.constant 0 : index
    %c0_9 = arith.constant 0 : index
    %c0_10 = arith.constant 0 : index
    %8 = vector.load %arg1[%c0_8, %c0_9, %c0_10] : memref<1x8x16xf32, #tpu.memory_space<vmem>>, vector<1x8x16xf32>
    %9 = vector.shape_cast %8 : vector<1x8x16xf32> to vector<8x16xf32>
    %10 = arith.truncf %9 : vector<8x16xf32> to vector<8x16xbf16>
    %c0_11 = arith.constant 0 : index
    %c0_12 = arith.constant 0 : index
    %11 = vector.load %arg2[%c0_11, %c0_12] : memref<16x32xbf16, #tpu.memory_space<vmem>>, vector<16x32xbf16>
    %cst = arith.constant dense<0.000000e+00> : vector<8x32xf32>
    %12 = tpu.matmul %10, %11, %cst {dimension_numbers = #tpu.dot_dimension_numbers<[1], [0], [0], [1], [0, 0, 1, 1], [], []>} : vector<8x16xbf16>, vector<16x32xbf16>, vector<8x32xf32> -> vector<8x32xf32>
    %13 = vector.broadcast %0 : vector<1x32xf32> to vector<8x32xf32>
    %14 = arith.addf %12, %13 : vector<8x32xf32>
    %15 = arith.truncf %14 : vector<8x32xf32> to vector<8x32xbf16>
    %c0_13 = arith.constant 0 : index
    %c0_14 = arith.constant 0 : index
    %16 = vector.load %arg3[%c0_13, %c0_14] : memref<32x96xbf16, #tpu.memory_space<vmem>>, vector<32x96xbf16>
    %cst_15 = arith.constant dense<0.000000e+00> : vector<8x96xf32>
    %17 = tpu.matmul %15, %16, %cst_15 {dimension_numbers = #tpu.dot_dimension_numbers<[1], [0], [0], [1], [0, 0, 1, 1], [], []>} : vector<8x32xbf16>, vector<32x96xbf16>, vector<8x96xf32> -> vector<8x96xf32>
    %c0_16 = arith.constant 0 : index
    %c0_17 = arith.constant 0 : index
    %18 = vector.load %arg10[%c0_16, %c0_17] : memref<1x96xf32, #tpu.memory_space<vmem>>, vector<1x96xf32>
    %19 = vector.broadcast %18 : vector<1x96xf32> to vector<8x96xf32>
    %20 = arith.addf %17, %19 : vector<8x96xf32>
    %cst_18 = arith.constant 0.000000e+00 : f32
    %21 = vector.broadcast %cst_18 : f32 to vector<8x32xf32>
    %22 = vector.extract_strided_slice %20 {offsets = [0, 0], sizes = [8, 8], strides = [1, 1]} : vector<8x96xf32> to vector<8x8xf32>
    %23 = vector.extract_strided_slice %20 {offsets = [0, 32], sizes = [8, 8], strides = [1, 1]} : vector<8x96xf32> to vector<8x8xf32>
    %24 = vector.extract_strided_slice %20 {offsets = [0, 64], sizes = [8, 8], strides = [1, 1]} : vector<8x96xf32> to vector<8x8xf32>
    %cst_19 = arith.constant dense<0.000000e+00> : vector<8x8xf32>
    %25 = tpu.matmul %22, %23, %cst_19 {dimension_numbers = #tpu.dot_dimension_numbers<[1], [1], [0], [0], [0, 0, 1, 0], [], []>} : vector<8x8xf32>, vector<8x8xf32>, vector<8x8xf32> -> vector<8x8xf32>
    %cst_20 = arith.constant dense<0xFF800000> : vector<8xf32>
    %26 = vector.multi_reduction <maximumf>, %25, %cst_20 [1] : vector<8x8xf32> to vector<8xf32>
    %27 = vector.shape_cast %26 : vector<8xf32> to vector<8x1xf32>
    %28 = vector.broadcast %27 : vector<8x1xf32> to vector<8x8xf32>
    %29 = arith.subf %25, %28 : vector<8x8xf32>
    %30 = math.exp %29 : vector<8x8xf32>
    %cst_21 = arith.constant dense<0.000000e+00> : vector<8xf32>
    %31 = vector.multi_reduction <add>, %30, %cst_21 [1] : vector<8x8xf32> to vector<8xf32>
    %32 = vector.shape_cast %31 : vector<8xf32> to vector<8x1xf32>
    %33 = vector.broadcast %32 : vector<8x1xf32> to vector<8x8xf32>
    %34 = arith.divf %30, %33 : vector<8x8xf32>
    %cst_22 = arith.constant dense<0.000000e+00> : vector<8x8xf32>
    %35 = tpu.matmul %34, %24, %cst_22 {dimension_numbers = #tpu.dot_dimension_numbers<[1], [0], [0], [1], [0, 0, 1, 1], [], []>} : vector<8x8xf32>, vector<8x8xf32>, vector<8x8xf32> -> vector<8x8xf32>
    %36 = arith.truncf %35 : vector<8x8xf32> to vector<8x8xbf16>
    %c0_23 = arith.constant 0 : index
    %c0_24 = arith.constant 0 : index
    %c0_25 = arith.constant 0 : index
    %37 = vector.load %arg4[%c0_23, %c0_24, %c0_25] : memref<4x8x32xbf16, #tpu.memory_space<vmem>>, vector<1x8x32xbf16>
    %38 = vector.shape_cast %37 : vector<1x8x32xbf16> to vector<8x32xbf16>
    %cst_26 = arith.constant dense<0.000000e+00> : vector<8x32xf32>
    %39 = tpu.matmul %36, %38, %cst_26 {dimension_numbers = #tpu.dot_dimension_numbers<[1], [0], [0], [1], [0, 0, 1, 1], [], []>} : vector<8x8xbf16>, vector<8x32xbf16>, vector<8x32xf32> -> vector<8x32xf32>
    %40 = arith.addf %21, %39 : vector<8x32xf32>
    %41 = vector.extract_strided_slice %20 {offsets = [0, 8], sizes = [8, 8], strides = [1, 1]} : vector<8x96xf32> to vector<8x8xf32>
    %42 = vector.extract_strided_slice %20 {offsets = [0, 40], sizes = [8, 8], strides = [1, 1]} : vector<8x96xf32> to vector<8x8xf32>
    %43 = vector.extract_strided_slice %20 {offsets = [0, 72], sizes = [8, 8], strides = [1, 1]} : vector<8x96xf32> to vector<8x8xf32>
    %cst_27 = arith.constant dense<0.000000e+00> : vector<8x8xf32>
    %44 = tpu.matmul %41, %42, %cst_27 {dimension_numbers = #tpu.dot_dimension_numbers<[1], [1], [0], [0], [0, 0, 1, 0], [], []>} : vector<8x8xf32>, vector<8x8xf32>, vector<8x8xf32> -> vector<8x8xf32>
    %cst_28 = arith.constant dense<0xFF800000> : vector<8xf32>
    %45 = vector.multi_reduction <maximumf>, %44, %cst_28 [1] : vector<8x8xf32> to vector<8xf32>
    %46 = vector.shape_cast %45 : vector<8xf32> to vector<8x1xf32>
    %47 = vector.broadcast %46 : vector<8x1xf32> to vector<8x8xf32>
    %48 = arith.subf %44, %47 : vector<8x8xf32>
    %49 = math.exp %48 : vector<8x8xf32>
    %cst_29 = arith.constant dense<0.000000e+00> : vector<8xf32>
    %50 = vector.multi_reduction <add>, %49, %cst_29 [1] : vector<8x8xf32> to vector<8xf32>
    %51 = vector.shape_cast %50 : vector<8xf32> to vector<8x1xf32>
    %52 = vector.broadcast %51 : vector<8x1xf32> to vector<8x8xf32>
    %53 = arith.divf %49, %52 : vector<8x8xf32>
    %cst_30 = arith.constant dense<0.000000e+00> : vector<8x8xf32>
    %54 = tpu.matmul %53, %43, %cst_30 {dimension_numbers = #tpu.dot_dimension_numbers<[1], [0], [0], [1], [0, 0, 1, 1], [], []>} : vector<8x8xf32>, vector<8x8xf32>, vector<8x8xf32> -> vector<8x8xf32>
    %55 = arith.truncf %54 : vector<8x8xf32> to vector<8x8xbf16>
    %c1_31 = arith.constant 1 : index
    %c0_32 = arith.constant 0 : index
    %c0_33 = arith.constant 0 : index
    %56 = vector.load %arg4[%c1_31, %c0_32, %c0_33] : memref<4x8x32xbf16, #tpu.memory_space<vmem>>, vector<1x8x32xbf16>
    %57 = vector.shape_cast %56 : vector<1x8x32xbf16> to vector<8x32xbf16>
    %cst_34 = arith.constant dense<0.000000e+00> : vector<8x32xf32>
    %58 = tpu.matmul %55, %57, %cst_34 {dimension_numbers = #tpu.dot_dimension_numbers<[1], [0], [0], [1], [0, 0, 1, 1], [], []>} : vector<8x8xbf16>, vector<8x32xbf16>, vector<8x32xf32> -> vector<8x32xf32>
    %59 = arith.addf %40, %58 : vector<8x32xf32>
    %60 = vector.extract_strided_slice %20 {offsets = [0, 16], sizes = [8, 8], strides = [1, 1]} : vector<8x96xf32> to vector<8x8xf32>
    %61 = vector.extract_strided_slice %20 {offsets = [0, 48], sizes = [8, 8], strides = [1, 1]} : vector<8x96xf32> to vector<8x8xf32>
    %62 = vector.extract_strided_slice %20 {offsets = [0, 80], sizes = [8, 8], strides = [1, 1]} : vector<8x96xf32> to vector<8x8xf32>
    %cst_35 = arith.constant dense<0.000000e+00> : vector<8x8xf32>
    %63 = tpu.matmul %60, %61, %cst_35 {dimension_numbers = #tpu.dot_dimension_numbers<[1], [1], [0], [0], [0, 0, 1, 0], [], []>} : vector<8x8xf32>, vector<8x8xf32>, vector<8x8xf32> -> vector<8x8xf32>
    %cst_36 = arith.constant dense<0xFF800000> : vector<8xf32>
    %64 = vector.multi_reduction <maximumf>, %63, %cst_36 [1] : vector<8x8xf32> to vector<8xf32>
    %65 = vector.shape_cast %64 : vector<8xf32> to vector<8x1xf32>
    %66 = vector.broadcast %65 : vector<8x1xf32> to vector<8x8xf32>
    %67 = arith.subf %63, %66 : vector<8x8xf32>
    %68 = math.exp %67 : vector<8x8xf32>
    %cst_37 = arith.constant dense<0.000000e+00> : vector<8xf32>
    %69 = vector.multi_reduction <add>, %68, %cst_37 [1] : vector<8x8xf32> to vector<8xf32>
    %70 = vector.shape_cast %69 : vector<8xf32> to vector<8x1xf32>
    %71 = vector.broadcast %70 : vector<8x1xf32> to vector<8x8xf32>
    %72 = arith.divf %68, %71 : vector<8x8xf32>
    %cst_38 = arith.constant dense<0.000000e+00> : vector<8x8xf32>
    %73 = tpu.matmul %72, %62, %cst_38 {dimension_numbers = #tpu.dot_dimension_numbers<[1], [0], [0], [1], [0, 0, 1, 1], [], []>} : vector<8x8xf32>, vector<8x8xf32>, vector<8x8xf32> -> vector<8x8xf32>
    %74 = arith.truncf %73 : vector<8x8xf32> to vector<8x8xbf16>
    %c2_39 = arith.constant 2 : index
    %c0_40 = arith.constant 0 : index
    %c0_41 = arith.constant 0 : index
    %75 = vector.load %arg4[%c2_39, %c0_40, %c0_41] : memref<4x8x32xbf16, #tpu.memory_space<vmem>>, vector<1x8x32xbf16>
    %76 = vector.shape_cast %75 : vector<1x8x32xbf16> to vector<8x32xbf16>
    %cst_42 = arith.constant dense<0.000000e+00> : vector<8x32xf32>
    %77 = tpu.matmul %74, %76, %cst_42 {dimension_numbers = #tpu.dot_dimension_numbers<[1], [0], [0], [1], [0, 0, 1, 1], [], []>} : vector<8x8xbf16>, vector<8x32xbf16>, vector<8x32xf32> -> vector<8x32xf32>
    %78 = arith.addf %59, %77 : vector<8x32xf32>
    %79 = vector.extract_strided_slice %20 {offsets = [0, 24], sizes = [8, 8], strides = [1, 1]} : vector<8x96xf32> to vector<8x8xf32>
    %80 = vector.extract_strided_slice %20 {offsets = [0, 56], sizes = [8, 8], strides = [1, 1]} : vector<8x96xf32> to vector<8x8xf32>
    %81 = vector.extract_strided_slice %20 {offsets = [0, 88], sizes = [8, 8], strides = [1, 1]} : vector<8x96xf32> to vector<8x8xf32>
    %cst_43 = arith.constant dense<0.000000e+00> : vector<8x8xf32>
    %82 = tpu.matmul %79, %80, %cst_43 {dimension_numbers = #tpu.dot_dimension_numbers<[1], [1], [0], [0], [0, 0, 1, 0], [], []>} : vector<8x8xf32>, vector<8x8xf32>, vector<8x8xf32> -> vector<8x8xf32>
    %cst_44 = arith.constant dense<0xFF800000> : vector<8xf32>
    %83 = vector.multi_reduction <maximumf>, %82, %cst_44 [1] : vector<8x8xf32> to vector<8xf32>
    %84 = vector.shape_cast %83 : vector<8xf32> to vector<8x1xf32>
    %85 = vector.broadcast %84 : vector<8x1xf32> to vector<8x8xf32>
    %86 = arith.subf %82, %85 : vector<8x8xf32>
    %87 = math.exp %86 : vector<8x8xf32>
    %cst_45 = arith.constant dense<0.000000e+00> : vector<8xf32>
    %88 = vector.multi_reduction <add>, %87, %cst_45 [1] : vector<8x8xf32> to vector<8xf32>
    %89 = vector.shape_cast %88 : vector<8xf32> to vector<8x1xf32>
    %90 = vector.broadcast %89 : vector<8x1xf32> to vector<8x8xf32>
    %91 = arith.divf %87, %90 : vector<8x8xf32>
    %cst_46 = arith.constant dense<0.000000e+00> : vector<8x8xf32>
    %92 = tpu.matmul %91, %81, %cst_46 {dimension_numbers = #tpu.dot_dimension_numbers<[1], [0], [0], [1], [0, 0, 1, 1], [], []>} : vector<8x8xf32>, vector<8x8xf32>, vector<8x8xf32> -> vector<8x8xf32>
    %93 = arith.truncf %92 : vector<8x8xf32> to vector<8x8xbf16>
    %c3_47 = arith.constant 3 : index
    %c0_48 = arith.constant 0 : index
    %c0_49 = arith.constant 0 : index
    %94 = vector.load %arg4[%c3_47, %c0_48, %c0_49] : memref<4x8x32xbf16, #tpu.memory_space<vmem>>, vector<1x8x32xbf16>
    %95 = vector.shape_cast %94 : vector<1x8x32xbf16> to vector<8x32xbf16>
    %cst_50 = arith.constant dense<0.000000e+00> : vector<8x32xf32>
    %96 = tpu.matmul %93, %95, %cst_50 {dimension_numbers = #tpu.dot_dimension_numbers<[1], [0], [0], [1], [0, 0, 1, 1], [], []>} : vector<8x8xbf16>, vector<8x32xbf16>, vector<8x32xf32> -> vector<8x32xf32>
    %97 = arith.addf %78, %96 : vector<8x32xf32>
    %98 = vector.broadcast %1 : vector<1x32xf32> to vector<8x32xf32>
    %99 = arith.addf %97, %98 : vector<8x32xf32>
    %100 = arith.addf %14, %99 : vector<8x32xf32>
    %cst_51 = arith.constant dense<0.000000e+00> : vector<8xf32>
    %101 = vector.multi_reduction <add>, %100, %cst_51 [1] : vector<8x32xf32> to vector<8xf32>
    %102 = vector.shape_cast %101 : vector<8xf32> to vector<8x1xf32>
    %cst_52 = arith.constant 3.200000e+01 : f32
    %103 = vector.broadcast %cst_52 : f32 to vector<8x1xf32>
    %104 = arith.divf %102, %103 : vector<8x1xf32>
    %105 = vector.broadcast %104 : vector<8x1xf32> to vector<8x32xf32>
    %106 = arith.subf %100, %105 : vector<8x32xf32>
    %107 = arith.mulf %106, %106 : vector<8x32xf32>
    %cst_53 = arith.constant dense<0.000000e+00> : vector<8xf32>
    %108 = vector.multi_reduction <add>, %107, %cst_53 [1] : vector<8x32xf32> to vector<8xf32>
    %109 = vector.shape_cast %108 : vector<8xf32> to vector<8x1xf32>
    %cst_54 = arith.constant 3.200000e+01 : f32
    %110 = vector.broadcast %cst_54 : f32 to vector<8x1xf32>
    %111 = arith.divf %109, %110 : vector<8x1xf32>
    %112 = vector.broadcast %104 : vector<8x1xf32> to vector<8x32xf32>
    %113 = arith.subf %100, %112 : vector<8x32xf32>
    %cst_55 = arith.constant 9.99999974E-6 : f32
    %114 = vector.broadcast %cst_55 : f32 to vector<8x1xf32>
    %115 = arith.addf %111, %114 : vector<8x1xf32>
    %116 = math.rsqrt %115 : vector<8x1xf32>
    %117 = vector.broadcast %116 : vector<8x1xf32> to vector<8x32xf32>
    %118 = arith.mulf %113, %117 : vector<8x32xf32>
    %119 = vector.broadcast %2 : vector<1x32xf32> to vector<8x32xf32>
    %120 = arith.mulf %118, %119 : vector<8x32xf32>
    %121 = vector.broadcast %3 : vector<1x32xf32> to vector<8x32xf32>
    %122 = arith.addf %120, %121 : vector<8x32xf32>
    %123 = arith.truncf %122 : vector<8x32xf32> to vector<8x32xbf16>
    %c0_56 = arith.constant 0 : index
    %c0_57 = arith.constant 0 : index
    %124 = vector.load %arg5[%c0_56, %c0_57] : memref<32x128xbf16, #tpu.memory_space<vmem>>, vector<32x128xbf16>
    %cst_58 = arith.constant dense<0.000000e+00> : vector<8x128xf32>
    %125 = tpu.matmul %123, %124, %cst_58 {dimension_numbers = #tpu.dot_dimension_numbers<[1], [0], [0], [1], [0, 0, 1, 1], [], []>} : vector<8x32xbf16>, vector<32x128xbf16>, vector<8x128xf32> -> vector<8x128xf32>
    %c0_59 = arith.constant 0 : index
    %c0_60 = arith.constant 0 : index
    %126 = vector.load %arg11[%c0_59, %c0_60] : memref<1x128xf32, #tpu.memory_space<vmem>>, vector<1x128xf32>
    %127 = vector.broadcast %126 : vector<1x128xf32> to vector<8x128xf32>
    %128 = arith.addf %125, %127 : vector<8x128xf32>
    %cst_61 = arith.constant 0.000000e+00 : f32
    %129 = vector.broadcast %cst_61 : f32 to vector<8x128xf32>
    %130 = arith.maximumf %128, %129 : vector<8x128xf32>
    %131 = arith.truncf %130 : vector<8x128xf32> to vector<8x128xbf16>
    %c0_62 = arith.constant 0 : index
    %c0_63 = arith.constant 0 : index
    %132 = vector.load %arg6[%c0_62, %c0_63] : memref<128x32xbf16, #tpu.memory_space<vmem>>, vector<128x32xbf16>
    %cst_64 = arith.constant dense<0.000000e+00> : vector<8x32xf32>
    %133 = tpu.matmul %131, %132, %cst_64 {dimension_numbers = #tpu.dot_dimension_numbers<[1], [0], [0], [1], [0, 0, 1, 1], [], []>} : vector<8x128xbf16>, vector<128x32xbf16>, vector<8x32xf32> -> vector<8x32xf32>
    %134 = vector.broadcast %4 : vector<1x32xf32> to vector<8x32xf32>
    %135 = arith.addf %133, %134 : vector<8x32xf32>
    %136 = arith.addf %122, %135 : vector<8x32xf32>
    %cst_65 = arith.constant dense<0.000000e+00> : vector<8xf32>
    %137 = vector.multi_reduction <add>, %136, %cst_65 [1] : vector<8x32xf32> to vector<8xf32>
    %138 = vector.shape_cast %137 : vector<8xf32> to vector<8x1xf32>
    %cst_66 = arith.constant 3.200000e+01 : f32
    %139 = vector.broadcast %cst_66 : f32 to vector<8x1xf32>
    %140 = arith.divf %138, %139 : vector<8x1xf32>
    %141 = vector.broadcast %140 : vector<8x1xf32> to vector<8x32xf32>
    %142 = arith.subf %136, %141 : vector<8x32xf32>
    %143 = arith.mulf %142, %142 : vector<8x32xf32>
    %cst_67 = arith.constant dense<0.000000e+00> : vector<8xf32>
    %144 = vector.multi_reduction <add>, %143, %cst_67 [1] : vector<8x32xf32> to vector<8xf32>
    %145 = vector.shape_cast %144 : vector<8xf32> to vector<8x1xf32>
    %cst_68 = arith.constant 3.200000e+01 : f32
    %146 = vector.broadcast %cst_68 : f32 to vector<8x1xf32>
    %147 = arith.divf %145, %146 : vector<8x1xf32>
    %148 = vector.broadcast %140 : vector<8x1xf32> to vector<8x32xf32>
    %149 = arith.subf %136, %148 : vector<8x32xf32>
    %cst_69 = arith.constant 9.99999974E-6 : f32
    %150 = vector.broadcast %cst_69 : f32 to vector<8x1xf32>
    %151 = arith.addf %147, %150 : vector<8x1xf32>
    %152 = math.rsqrt %151 : vector<8x1xf32>
    %153 = vector.broadcast %152 : vector<8x1xf32> to vector<8x32xf32>
    %154 = arith.mulf %149, %153 : vector<8x32xf32>
    %155 = vector.broadcast %5 : vector<1x32xf32> to vector<8x32xf32>
    %156 = arith.mulf %154, %155 : vector<8x32xf32>
    %157 = vector.broadcast %6 : vector<1x32xf32> to vector<8x32xf32>
    %158 = arith.addf %156, %157 : vector<8x32xf32>
    %159 = arith.truncf %158 : vector<8x32xf32> to vector<8x32xbf16>
    %c0_70 = arith.constant 0 : index
    %c0_71 = arith.constant 0 : index
    %160 = vector.load %arg7[%c0_70, %c0_71] : memref<32x32xbf16, #tpu.memory_space<vmem>>, vector<32x32xbf16>
    %cst_72 = arith.constant dense<0.000000e+00> : vector<8x32xf32>
    %161 = tpu.matmul %159, %160, %cst_72 {dimension_numbers = #tpu.dot_dimension_numbers<[1], [0], [0], [1], [0, 0, 1, 1], [], []>} : vector<8x32xbf16>, vector<32x32xbf16>, vector<8x32xf32> -> vector<8x32xf32>
    %162 = vector.broadcast %7 : vector<1x32xf32> to vector<8x32xf32>
    %163 = arith.addf %161, %162 : vector<8x32xf32>
    %cst_73 = arith.constant 0.000000e+00 : f32
    %164 = vector.broadcast %cst_73 : f32 to vector<8x32xf32>
    %165 = arith.maximumf %163, %164 : vector<8x32xf32>
    %166 = arith.truncf %165 : vector<8x32xf32> to vector<8x32xbf16>
    %c0_74 = arith.constant 0 : index
    %c0_75 = arith.constant 0 : index
    %167 = vector.load %arg8[%c0_74, %c0_75] : memref<32x128xbf16, #tpu.memory_space<vmem>>, vector<32x128xbf16>
    %cst_76 = arith.constant dense<0.000000e+00> : vector<8x128xf32>
    %168 = tpu.matmul %166, %167, %cst_76 {dimension_numbers = #tpu.dot_dimension_numbers<[1], [0], [0], [1], [0, 0, 1, 1], [], []>} : vector<8x32xbf16>, vector<32x128xbf16>, vector<8x128xf32> -> vector<8x128xf32>
    %c0_77 = arith.constant 0 : index
    %c0_78 = arith.constant 0 : index
    %169 = vector.load %arg12[%c0_77, %c0_78] : memref<1x128xf32, #tpu.memory_space<vmem>>, vector<1x128xf32>
    %170 = vector.broadcast %169 : vector<1x128xf32> to vector<8x128xf32>
    %171 = arith.addf %168, %170 : vector<8x128xf32>
    %c0_79 = arith.constant 0 : index
    %c0_80 = arith.constant 0 : index
    %c0_81 = arith.constant 0 : index
    %172 = vector.load %arg13[%c0_79, %c0_80, %c0_81] : memref<1x8x128xf32, #tpu.memory_space<vmem>>, vector<1x8x128xf32>
    %173 = vector.shape_cast %172 : vector<1x8x128xf32> to vector<8x128xf32>
    %174 = vector.shape_cast %171 : vector<8x128xf32> to vector<1x8x128xf32>
    tpu.vector_store %arg13[%c0_79, %c0_80, %c0_81], %174 {strides = array<i32>} : memref<1x8x128xf32, #tpu.memory_space<vmem>>, vector<1x8x128xf32>,
    return
  }
  func.func @transform_0(%arg0: i32) -> (i32, i32, i32) {
    %c0_i32 = arith.constant 0 : i32
    %c0_i32_0 = arith.constant 0 : i32
    %c0_i32_1 = arith.constant 0 : i32
    return %arg0, %c0_i32, %c0_i32_0 : i32, i32, i32
  }
  func.func @transform_1(%arg0: i32) -> (i32, i32) {
    %c0_i32 = arith.constant 0 : i32
    %c0_i32_0 = arith.constant 0 : i32
    %c0_i32_1 = arith.constant 0 : i32
    return %c0_i32, %c0_i32_0 : i32, i32
  }
  func.func @transform_2(%arg0: i32) -> (i32, i32) {
    %c0_i32 = arith.constant 0 : i32
    %c0_i32_0 = arith.constant 0 : i32
    %c0_i32_1 = arith.constant 0 : i32
    return %c0_i32, %c0_i32_0 : i32, i32
  }
  func.func @transform_3(%arg0: i32) -> (i32, i32, i32) {
    %c0_i32 = arith.constant 0 : i32
    %c0_i32_0 = arith.constant 0 : i32
    %c0_i32_1 = arith.constant 0 : i32
    %c0_i32_2 = arith.constant 0 : i32
    return %c0_i32, %c0_i32_0, %c0_i32_1 : i32, i32, i32
  }
  func.func @transform_4(%arg0: i32) -> (i32, i32) {
    %c0_i32 = arith.constant 0 : i32
    %c0_i32_0 = arith.constant 0 : i32
    %c0_i32_1 = arith.constant 0 : i32
    return %c0_i32, %c0_i32_0 : i32, i32
  }
  func.func @transform_5(%arg0: i32) -> (i32, i32) {
    %c0_i32 = arith.constant 0 : i32
    %c0_i32_0 = arith.constant 0 : i32
    %c0_i32_1 = arith.constant 0 : i32
    return %c0_i32, %c0_i32_0 : i32, i32
  }
  func.func @transform_6(%arg0: i32) -> (i32, i32) {
    %c0_i32 = arith.constant 0 : i32
    %c0_i32_0 = arith.constant 0 : i32
    %c0_i32_1 = arith.constant 0 : i32
    return %c0_i32, %c0_i32_0 : i32, i32
  }
  func.func @transform_7(%arg0: i32) -> (i32, i32) {
    %c0_i32 = arith.constant 0 : i32
    %c0_i32_0 = arith.constant 0 : i32
    %c0_i32_1 = arith.constant 0 : i32
    return %c0_i32, %c0_i32_0 : i32, i32
  }
  func.func @transform_8(%arg0: i32) -> (i32, i32) {
    %c0_i32 = arith.constant 0 : i32
    %c0_i32_0 = arith.constant 0 : i32
    %c0_i32_1 = arith.constant 0 : i32
    return %c0_i32, %c0_i32_0 : i32, i32
  }
  func.func @transform_9(%arg0: i32) -> (i32, i32) {
    %c0_i32 = arith.constant 0 : i32
    %c0_i32_0 = arith.constant 0 : i32
    %c0_i32_1 = arith.constant 0 : i32
    return %c0_i32, %c0_i32_0 : i32, i32
  }
  func.func @transform_10(%arg0: i32) -> (i32, i32) {
    %c0_i32 = arith.constant 0 : i32
    %c0_i32_0 = arith.constant 0 : i32
    %c0_i32_1 = arith.constant 0 : i32
    return %c0_i32, %c0_i32_0 : i32, i32
  }
  func.func @transform_11(%arg0: i32) -> (i32, i32) {
    %c0_i32 = arith.constant 0 : i32
    %c0_i32_0 = arith.constant 0 : i32
    %c0_i32_1 = arith.constant 0 : i32
    return %c0_i32, %c0_i32_0 : i32, i32
  }
  func.func @transform_12(%arg0: i32) -> (i32, i32, i32) {
    %c0_i32 = arith.constant 0 : i32
    %c0_i32_0 = arith.constant 0 : i32
    %c0_i32_1 = arith.constant 0 : i32
    return %arg0, %c0_i32, %c0_i32_0 : i32, i32, i32
  }
}

</mosaic_0001>

<llo_original>
// kernel: tpu_custom_call.1
$region0: #{tpu_custom_call.1}
  #allocation0 [shape = 'u32[]', space=smem, size = 0x4, offset = 0x4, fixed_abs, tag = 'smem constant byte address 0x4 - core index']
  #allocation1 [shape = 'u32[144,128]{1,0:T(1,128)}', space=vmem, size = 0x12000, scoped, tag = 'internal scratch']
  %s0 = inlined_call_operand.vmem [shape: f32[2,8,16], index: 0, kind: input, shape index: {}]
  %s1 = inlined_call_operand.hbm [shape: bf16[16,32], index: 1, kind: input, shape index: {}]
  %s2 = inlined_call_operand.vmem [shape: bf16[32,96], index: 2, kind: input, shape index: {}]
  %s3 = inlined_call_operand.vmem [shape: bf16[4,8,32], index: 3, kind: input, shape index: {}]
  %s4 = inlined_call_operand.vmem [shape: bf16[32,128], index: 4, kind: input, shape index: {}]
  %s5 = inlined_call_operand.vmem [shape: bf16[128,32], index: 5, kind: input, shape index: {}]
  %s6 = inlined_call_operand.vmem [shape: bf16[32,32], index: 6, kind: input, shape index: {}]
  %s7 = inlined_call_operand.hbm [shape: bf16[32,128], index: 7, kind: input, shape index: {}]
  %s8 = inlined_call_operand.vmem [shape: f32[8,32], index: 8, kind: input, shape index: {}]
  %s9 = inlined_call_operand.vmem [shape: f32[1,96], index: 9, kind: input, shape index: {}]
  %s10 = inlined_call_operand.vmem [shape: f32[1,128], index: 10, kind: input, shape index: {}]
  %s11 = inlined_call_operand.vmem [shape: f32[1,128], index: 11, kind: input, shape index: {}]
  %s12 = inlined_call_operand.hbm [shape: f32[2,8,128], index: 12, kind: output, shape index: {}]
  %s13 = sld [smem:[#allocation0]]
  $region89: #{tpu_custom_call.1} parent=0
    _
  %s15 = ssub.s32 1, %s13
  %s16 = scalar_select 0, %s15, %s13
  $region1: #{tpu_custom_call.1} parent=0
    #allocation2 [shape = 'u8[4096]{0}', space=vmem, size = 0x1000, scoped, tag = 'input window, operand 1, single buffered']
    #allocation3 [shape = 's32[2]{0}', space=sflag, size = 0x8, scoped, tag = 'scoped memory for tpu_custom_call.1']
    #allocation4 [shape = 's32[2]{0}', space=sflag, size = 0x8, scoped, tag = 'scoped memory for tpu_custom_call.1']
    #allocation5 [shape = 'u8[8192]{0}', space=vmem, size = 0x2000, scoped, tag = 'input window, operand 7, single buffered']
    #allocation6 [shape = 's32[1]{0}', space=sflag, size = 0x4, scoped, tag = 'scoped memory for tpu_custom_call.1']
    #allocation7 [shape = 'u8[8192]{0}', space=vmem, size = 0x2000, scoped, tag = 'output window, operand 0']
    %17 = vsyncpa [#allocation3], 0
    %18 = vsyncpa [#allocation6], 0
    %19 = vsyncpa [#allocation4], 0
    %s20 = scalar_lea.sflag [#allocation4], 1
    %21 = vsyncpa %s20, 0
    loop: start=0, step=1, limit=4
    $region2: #{tpu_custom_call.1} parent=1 // loop_pre_header
      _
    $region3: #{tpu_custom_call.1} parent=1 // loop_header
      %s23 = sphi 0, %s27
      %p24 = scmp.ge.s32.totalorder %s23, 4
      %s33 = sphi 0, %s35
      %s36 = sphi 0, %s33
      %s37 = sphi 0, %s36
      %s53 = sphi 0, %s37
      %s57 = sphi 0, %s57
      %s59 = sphi 0, %s57
      %s60 = sphi 0, %s59
      %s74 = sphi 0, %s60
      %s78 = sphi 0, %s78
      %s80 = sphi 0, %s78
      %s81 = sphi 0, %s80
      %s95 = sphi 0, %s81
      %s99 = sphi 0, %s99
      %s101 = sphi 0, %s99
      %s102 = sphi 0, %s101
      %s116 = sphi 0, %s102
      %s120 = sphi 0, %s120
      %s122 = sphi 0, %s120
      %s123 = sphi 0, %s122
      %s137 = sphi 0, %s123
      %s141 = sphi 0, %s141
      %s143 = sphi 0, %s141
      %s144 = sphi 0, %s143
      %s158 = sphi 0, %s144
      %s162 = sphi 0, %s162
      %s164 = sphi 0, %s162
      %s165 = sphi 0, %s164
      %s179 = sphi 0, %s165
      %s183 = sphi 0, %s183
      %s185 = sphi 0, %s183
      %s186 = sphi 0, %s185
      %s200 = sphi 0, %s186
      %s204 = sphi 0, %s204
      %s206 = sphi 0, %s204
      %s207 = sphi 0, %s206
      %s221 = sphi 0, %s207
      %s225 = sphi 0, %s225
      %s227 = sphi 0, %s225
      %s228 = sphi 0, %s227
      %s242 = sphi 0, %s228
      %s246 = sphi 0, %s246
      %s248 = sphi 0, %s246
      %s249 = sphi 0, %s248
      %s263 = sphi 0, %s249
      %s267 = sphi 0, %s267
      %s269 = sphi 0, %s267
      %s270 = sphi 0, %s269
      %s284 = sphi 0, %s270
      %s290 = sphi 0, %s292
      %s293 = sphi 0, %s290
      %s294 = sphi 0, %s293
      %s310 = sphi 0, %s294
    $region4: #{tpu_custom_call.1} parent=1 // loop_header_branch
      %26 = sbr.rel (%p24) target = $region8
    $region5: #{tpu_custom_call.1} parent=1 // loop_body
      %s28 = ssub.s32 %s23, 1
      %s29 = ssub.s32 %s23, 2
      %s30 = sadd.s32 %s23, 1
      %s31 = ssub.s32 %s23, %s30
      %p32 = scmp.eq.s32.totalorder %s31, 0
      %s34 = sadd.s32 %s33, 1
      %s35 = scalar_select %p32, %s33, %s34
      %p38 = pneg %p32
      %p39 = scmp.eq.s32.totalorder %s23, 1
      %p40 = por %p38, %p39
      %p41 = scmp.ne.s32.totalorder %s33, %s36
      %p42 = scmp.eq.s32.totalorder %s23, 0
      %p43 = por %p41, %p42
      %p44 = scmp.ne.s32.totalorder %s33, %s36
      %p45 = scmp.eq.s32.totalorder %s28, 1
      %p46 = por %p44, %p45
      %p47 = scmp.ne.s32.totalorder %s36, %s37
      %p48 = scmp.eq.s32.totalorder %s28, 0
      %p49 = por %p47, %p48
      %p50 = scmp.ne.s32.totalorder %s36, %s37
      %p51 = scmp.eq.s32.totalorder %s29, 1
      %p52 = por %p50, %p51
      %p54 = scmp.ne.s32.totalorder %s37, %s53
      %p55 = scmp.eq.s32.totalorder %s29, 0
      %p56 = por %p54, %p55
      %s58 = sadd.s32 %s57, 1
      %p61 = scmp.eq.s32.totalorder %s23, 1
      %p62 = scmp.ne.s32.totalorder %s57, %s59
      %p63 = scmp.eq.s32.totalorder %s23, 0
      %p64 = por %p62, %p63
      %p65 = scmp.ne.s32.totalorder %s57, %s59
      %p66 = scmp.eq.s32.totalorder %s28, 1
      %p67 = por %p65, %p66
      %p68 = scmp.ne.s32.totalorder %s59, %s60
      %p69 = scmp.eq.s32.totalorder %s28, 0
      %p70 = por %p68, %p69
      %p71 = scmp.ne.s32.totalorder %s59, %s60
      %p72 = scmp.eq.s32.totalorder %s29, 1
      %p73 = por %p71, %p72
      %p75 = scmp.ne.s32.totalorder %s60, %s74
      %p76 = scmp.eq.s32.totalorder %s29, 0
      %p77 = por %p75, %p76
      %s79 = sadd.s32 %s78, 1
      %p82 = scmp.eq.s32.totalorder %s23, 1
      %p83 = scmp.ne.s32.totalorder %s78, %s80
      %p84 = scmp.eq.s32.totalorder %s23, 0
      %p85 = por %p83, %p84
      %p86 = scmp.ne.s32.totalorder %s78, %s80
      %p87 = scmp.eq.s32.totalorder %s28, 1
      %p88 = por %p86, %p87
      %p89 = scmp.ne.s32.totalorder %s80, %s81
      %p90 = scmp.eq.s32.totalorder %s28, 0
      %p91 = por %p89, %p90
      %p92 = scmp.ne.s32.totalorder %s80, %s81
      %p93 = scmp.eq.s32.totalorder %s29, 1
      %p94 = por %p92, %p93
      %p96 = scmp.ne.s32.totalorder %s81, %s95
      %p97 = scmp.eq.s32.totalorder %s29, 0
      %p98 = por %p96, %p97
      %s100 = sadd.s32 %s99, 1
      %p103 = scmp.eq.s32.totalorder %s23, 1
      %p104 = scmp.ne.s32.totalorder %s99, %s101
      %p105 = scmp.eq.s32.totalorder %s23, 0
      %p106 = por %p104, %p105
      %p107 = scmp.ne.s32.totalorder %s99, %s101
      %p108 = scmp.eq.s32.totalorder %s28, 1
      %p109 = por %p107, %p108
      %p110 = scmp.ne.s32.totalorder %s101, %s102
      %p111 = scmp.eq.s32.totalorder %s28, 0
      %p112 = por %p110, %p111
      %p113 = scmp.ne.s32.totalorder %s101, %s102
      %p114 = scmp.eq.s32.totalorder %s29, 1
      %p115 = por %p113, %p114
      %p117 = scmp.ne.s32.totalorder %s102, %s116
      %p118 = scmp.eq.s32.totalorder %s29, 0
      %p119 = por %p117, %p118
      %s121 = sadd.s32 %s120, 1
      %p124 = scmp.eq.s32.totalorder %s23, 1
      %p125 = scmp.ne.s32.totalorder %s120, %s122
      %p126 = scmp.eq.s32.totalorder %s23, 0
      %p127 = por %p125, %p126
      %p128 = scmp.ne.s32.totalorder %s120, %s122
      %p129 = scmp.eq.s32.totalorder %s28, 1
      %p130 = por %p128, %p129
      %p131 = scmp.ne.s32.totalorder %s122, %s123
      %p132 = scmp.eq.s32.totalorder %s28, 0
      %p133 = por %p131, %p132
      %p134 = scmp.ne.s32.totalorder %s122, %s123
      %p135 = scmp.eq.s32.totalorder %s29, 1
      %p136 = por %p134, %p135
      %p138 = scmp.ne.s32.totalorder %s123, %s137
      %p139 = scmp.eq.s32.totalorder %s29, 0
      %p140 = por %p138, %p139
      %s142 = sadd.s32 %s141, 1
      %p145 = scmp.eq.s32.totalorder %s23, 1
      %p146 = scmp.ne.s32.totalorder %s141, %s143
      %p147 = scmp.eq.s32.totalorder %s23, 0
      %p148 = por %p146, %p147
      %p149 = scmp.ne.s32.totalorder %s141, %s143
      %p150 = scmp.eq.s32.totalorder %s28, 1
      %p151 = por %p149, %p150
      %p152 = scmp.ne.s32.totalorder %s143, %s144
      %p153 = scmp.eq.s32.totalorder %s28, 0
      %p154 = por %p152, %p153
      %p155 = scmp.ne.s32.totalorder %s143, %s144
      %p156 = scmp.eq.s32.totalorder %s29, 1
      %p157 = por %p155, %p156
      %p159 = scmp.ne.s32.totalorder %s144, %s158
      %p160 = scmp.eq.s32.totalorder %s29, 0
      %p161 = por %p159, %p160
      %s163 = sadd.s32 %s162, 1
      %p166 = scmp.eq.s32.totalorder %s23, 1
      %p167 = scmp.ne.s32.totalorder %s162, %s164
      %p168 = scmp.eq.s32.totalorder %s23, 0
      %p169 = por %p167, %p168
      %p170 = scmp.ne.s32.totalorder %s162, %s164
      %p171 = scmp.eq.s32.totalorder %s28, 1
      %p172 = por %p170, %p171
      %p173 = scmp.ne.s32.totalorder %s164, %s165
      %p174 = scmp.eq.s32.totalorder %s28, 0
      %p175 = por %p173, %p174
      %p176 = scmp.ne.s32.totalorder %s164, %s165
      %p177 = scmp.eq.s32.totalorder %s29, 1
      %p178 = por %p176, %p177
      %p180 = scmp.ne.s32.totalorder %s165, %s179
      %p181 = scmp.eq.s32.totalorder %s29, 0
      %p182 = por %p180, %p181
      %s184 = sadd.s32 %s183, 1
      %p187 = scmp.eq.s32.totalorder %s23, 1
      %p188 = scmp.ne.s32.totalorder %s183, %s185
      %p189 = scmp.eq.s32.totalorder %s23, 0
      %p190 = por %p188, %p189
      %p191 = scmp.ne.s32.totalorder %s183, %s185
      %p192 = scmp.eq.s32.totalorder %s28, 1
      %p193 = por %p191, %p192
      %p194 = scmp.ne.s32.totalorder %s185, %s186
      %p195 = scmp.eq.s32.totalorder %s28, 0
      %p196 = por %p194, %p195
      %p197 = scmp.ne.s32.totalorder %s185, %s186
      %p198 = scmp.eq.s32.totalorder %s29, 1
      %p199 = por %p197, %p198
      %p201 = scmp.ne.s32.totalorder %s186, %s200
      %p202 = scmp.eq.s32.totalorder %s29, 0
      %p203 = por %p201, %p202
      %s205 = sadd.s32 %s204, 1
      %p208 = scmp.eq.s32.totalorder %s23, 1
      %p209 = scmp.ne.s32.totalorder %s204, %s206
      %p210 = scmp.eq.s32.totalorder %s23, 0
      %p211 = por %p209, %p210
      %p212 = scmp.ne.s32.totalorder %s204, %s206
      %p213 = scmp.eq.s32.totalorder %s28, 1
      %p214 = por %p212, %p213
      %p215 = scmp.ne.s32.totalorder %s206, %s207
      %p216 = scmp.eq.s32.totalorder %s28, 0
      %p217 = por %p215, %p216
      %p218 = scmp.ne.s32.totalorder %s206, %s207
      %p219 = scmp.eq.s32.totalorder %s29, 1
      %p220 = por %p218, %p219
      %p222 = scmp.ne.s32.totalorder %s207, %s221
      %p223 = scmp.eq.s32.totalorder %s29, 0
      %p224 = por %p222, %p223
      %s226 = sadd.s32 %s225, 1
      %p229 = scmp.eq.s32.totalorder %s23, 1
      %p230 = scmp.ne.s32.totalorder %s225, %s227
      %p231 = scmp.eq.s32.totalorder %s23, 0
      %p232 = por %p230, %p231
      %p233 = scmp.ne.s32.totalorder %s225, %s227
      %p234 = scmp.eq.s32.totalorder %s28, 1
      %p235 = por %p233, %p234
      %p236 = scmp.ne.s32.totalorder %s227, %s228
      %p237 = scmp.eq.s32.totalorder %s28, 0
      %p238 = por %p236, %p237
      %p239 = scmp.ne.s32.totalorder %s227, %s228
      %p240 = scmp.eq.s32.totalorder %s29, 1
      %p241 = por %p239, %p240
      %p243 = scmp.ne.s32.totalorder %s228, %s242
      %p244 = scmp.eq.s32.totalorder %s29, 0
      %p245 = por %p243, %p244
      %s247 = sadd.s32 %s246, 1
      %p250 = scmp.eq.s32.totalorder %s23, 1
      %p251 = scmp.ne.s32.totalorder %s246, %s248
      %p252 = scmp.eq.s32.totalorder %s23, 0
      %p253 = por %p251, %p252
      %p254 = scmp.ne.s32.totalorder %s246, %s248
      %p255 = scmp.eq.s32.totalorder %s28, 1
      %p256 = por %p254, %p255
      %p257 = scmp.ne.s32.totalorder %s248, %s249
      %p258 = scmp.eq.s32.totalorder %s28, 0
      %p259 = por %p257, %p258
      %p260 = scmp.ne.s32.totalorder %s248, %s249
      %p261 = scmp.eq.s32.totalorder %s29, 1
      %p262 = por %p260, %p261
      %p264 = scmp.ne.s32.totalorder %s249, %s263
      %p265 = scmp.eq.s32.totalorder %s29, 0
      %p266 = por %p264, %p265
      %s268 = sadd.s32 %s267, 1
      %p271 = scmp.eq.s32.totalorder %s23, 1
      %p272 = scmp.ne.s32.totalorder %s267, %s269
      %p273 = scmp.eq.s32.totalorder %s23, 0
      %p274 = por %p272, %p273
      %p275 = scmp.ne.s32.totalorder %s267, %s269
      %p276 = scmp.eq.s32.totalorder %s28, 1
      %p277 = por %p275, %p276
      %p278 = scmp.ne.s32.totalorder %s269, %s270
      %p279 = scmp.eq.s32.totalorder %s28, 0
      %p280 = por %p278, %p279
      %p281 = scmp.ne.s32.totalorder %s269, %s270
      %p282 = scmp.eq.s32.totalorder %s29, 1
      %p283 = por %p281, %p282
      %p285 = scmp.ne.s32.totalorder %s270, %s284
      %p286 = scmp.eq.s32.totalorder %s29, 0
      %p287 = por %p285, %p286
      %s288 = ssub.s32 %s23, %s30
      %p289 = scmp.eq.s32.totalorder %s288, 0
      %s291 = sadd.s32 %s290, 1
      %s292 = scalar_select %p289, %s290, %s291
      %p295 = pneg %p289
      %p296 = scmp.eq.s32.totalorder %s23, 1
      %p297 = por %p295, %p296
      %p298 = scmp.ne.s32.totalorder %s290, %s293
      %p299 = scmp.eq.s32.totalorder %s23, 0
      %p300 = por %p298, %p299
      %p301 = scmp.ne.s32.totalorder %s290, %s293
      %p302 = scmp.eq.s32.totalorder %s28, 1
      %p303 = por %p301, %p302
      %p304 = scmp.ne.s32.totalorder %s293, %s294
      %p305 = scmp.eq.s32.totalorder %s28, 0
      %p306 = por %p304, %p305
      %p307 = scmp.ne.s32.totalorder %s293, %s294
      %p308 = scmp.eq.s32.totalorder %s29, 1
      %p309 = por %p307, %p308
      %p311 = scmp.ne.s32.totalorder %s294, %s310
      %p312 = scmp.eq.s32.totalorder %s29, 0
      %p313 = por %p311, %p312
      %p314 = scmp.le.s32.totalorder 1, %s23
      %p315 = scmp.lt.s32.totalorder %s23, 3
      %p316 = pnand %p314, %p315
      %p317 = pneg %p316
      // Predicated region
      $region9: #{tpu_custom_call.1} parent=5 // pred_check
        _
      $region10: #{tpu_custom_call.1} parent=5 // pred_check_branch
        %319 = sbr.rel (%p316) target = $region12
      $region11: #{tpu_custom_call.1} parent=5 // pred_region
        %s320 = ssub.s32 %s23, 1
        // Predicated region
        $region13: #{tpu_custom_call.1} parent=11 // pred_check
          %p321 = pneg %p70
        $region14: #{tpu_custom_call.1} parent=11 // pred_check_branch
          %323 = sbr.rel (%p321) target = $region16
        $region15: #{tpu_custom_call.1} parent=11 // pred_region
          %s325 = ssub.s32 128, 128
          %326 = vsyncadd [#allocation3], %s325
          %s327 = sshll.u32 [#allocation2], 4
          %s328 = int_to_ptr.vmem [resolvable:$true] %s327
          %333 = dma.hbm_to_vmem [thread:$0]  %s1, 128, %s328, [#allocation3], 64, 64, 4
        $region16: #{tpu_custom_call.1} parent=11 // pred_fallthru
          _
        // Predicated region
        $region17: #{tpu_custom_call.1} parent=11 // pred_check
          %p334 = pneg %p91
        $region18: #{tpu_custom_call.1} parent=11 // pred_check_branch
          %336 = sbr.rel (%p334) target = $region20
        $region19: #{tpu_custom_call.1} parent=11 // pred_region
          _
        $region20: #{tpu_custom_call.1} parent=11 // pred_fallthru
          _
        // Predicated region
        $region21: #{tpu_custom_call.1} parent=11 // pred_check
          %p337 = pneg %p112
        $region22: #{tpu_custom_call.1} parent=11 // pred_check_branch
          %339 = sbr.rel (%p337) target = $region24
        $region23: #{tpu_custom_call.1} parent=11 // pred_region
          _
        $region24: #{tpu_custom_call.1} parent=11 // pred_fallthru
          _
        // Predicated region
        $region25: #{tpu_custom_call.1} parent=11 // pred_check
          %p340 = pneg %p133
        $region26: #{tpu_custom_call.1} parent=11 // pred_check_branch
          %342 = sbr.rel (%p340) target = $region28
        $region27: #{tpu_custom_call.1} parent=11 // pred_region
          _
        $region28: #{tpu_custom_call.1} parent=11 // pred_fallthru
          _
        // Predicated region
        $region29: #{tpu_custom_call.1} parent=11 // pred_check
          %p343 = pneg %p154
        $region30: #{tpu_custom_call.1} parent=11 // pred_check_branch
          %345 = sbr.rel (%p343) target = $region32
        $region31: #{tpu_custom_call.1} parent=11 // pred_region
          _
        $region32: #{tpu_custom_call.1} parent=11 // pred_fallthru
          _
        // Predicated region
        $region33: #{tpu_custom_call.1} parent=11 // pred_check
          %p346 = pneg %p175
        $region34: #{tpu_custom_call.1} parent=11 // pred_check_branch
          %348 = sbr.rel (%p346) target = $region36
        $region35: #{tpu_custom_call.1} parent=11 // pred_region
          _
        $region36: #{tpu_custom_call.1} parent=11 // pred_fallthru
          _
        // Predicated region
        $region37: #{tpu_custom_call.1} parent=11 // pred_check
          %p349 = pneg %p196
        $region38: #{tpu_custom_call.1} parent=11 // pred_check_branch
          %351 = sbr.rel (%p349) target = $region40
        $region39: #{tpu_custom_call.1} parent=11 // pred_region
          %s353 = ssub.s32 256, 256
          %354 = vsyncadd [#allocation6], %s353
          %s355 = sshll.u32 [#allocation5], 4
          %s356 = int_to_ptr.vmem [resolvable:$true] %s355
          %361 = dma.hbm_to_vmem [thread:$0]  %s7, 256, %s356, [#allocation6], 64, 64, 4
        $region40: #{tpu_custom_call.1} parent=11 // pred_fallthru
          _
        // Predicated region
        $region41: #{tpu_custom_call.1} parent=11 // pred_check
          %p362 = pneg %p217
        $region42: #{tpu_custom_call.1} parent=11 // pred_check_branch
          %364 = sbr.rel (%p362) target = $region44
        $region43: #{tpu_custom_call.1} parent=11 // pred_region
          _
        $region44: #{tpu_custom_call.1} parent=11 // pred_fallthru
          _
        // Predicated region
        $region45: #{tpu_custom_call.1} parent=11 // pred_check
          %p365 = pneg %p238
        $region46: #{tpu_custom_call.1} parent=11 // pred_check_branch
          %367 = sbr.rel (%p365) target = $region48
        $region47: #{tpu_custom_call.1} parent=11 // pred_region
          _
        $region48: #{tpu_custom_call.1} parent=11 // pred_fallthru
          _
        // Predicated region
        $region49: #{tpu_custom_call.1} parent=11 // pred_check
          %p368 = pneg %p259
        $region50: #{tpu_custom_call.1} parent=11 // pred_check_branch
          %370 = sbr.rel (%p368) target = $region52
        $region51: #{tpu_custom_call.1} parent=11 // pred_region
          _
        $region52: #{tpu_custom_call.1} parent=11 // pred_fallthru
          _
        // Predicated region
        $region53: #{tpu_custom_call.1} parent=11 // pred_check
          %p371 = pneg %p280
        $region54: #{tpu_custom_call.1} parent=11 // pred_check_branch
          %373 = sbr.rel (%p371) target = $region56
        $region55: #{tpu_custom_call.1} parent=11 // pred_region
          _
        $region56: #{tpu_custom_call.1} parent=11 // pred_fallthru
          _
      $region12: #{tpu_custom_call.1} parent=5 // pred_fallthru
        _
      %p374 = scmp.lt.s32.totalorder %s23, 2
      // Predicated region
      $region57: #{tpu_custom_call.1} parent=5 // pred_check
        %p375 = pneg %p374
      $region58: #{tpu_custom_call.1} parent=5 // pred_check_branch
        %377 = sbr.rel (%p375) target = $region60
      $region59: #{tpu_custom_call.1} parent=5 // pred_region
        // Predicated region
        $region61: #{tpu_custom_call.1} parent=59 // pred_check
          %p378 = pneg %p43
        $region62: #{tpu_custom_call.1} parent=59 // pred_check_branch
          %380 = sbr.rel (%p378) target = $region64
        $region63: #{tpu_custom_call.1} parent=59 // pred_region
          %p381 = scmp.lt.s32.totalorder %s23, 1
          %s382 = scalar_select %p381, %s23, 1
          %s383 = smul.addr %s382, 8
          %s384 = scalar_lea.vmem %s0, %s383
        $region64: #{tpu_custom_call.1} parent=59 // pred_fallthru
          _
      $region60: #{tpu_custom_call.1} parent=5 // pred_fallthru
        _
      %p385 = scmp.le.s32.totalorder 1, %s23
      %p386 = scmp.lt.s32.totalorder %s23, 3
      %p387 = pnand %p385, %p386
      %p388 = pneg %p387
      // Predicated region
      $region65: #{tpu_custom_call.1} parent=5 // pred_check
        _
      $region66: #{tpu_custom_call.1} parent=5 // pred_check_branch
        %390 = sbr.rel (%p387) target = $region68
      $region67: #{tpu_custom_call.1} parent=5 // pred_region
        %s391 = ssub.s32 %s23, 1
        // Predicated region
        $region69: #{tpu_custom_call.1} parent=67 // pred_check
          %p392 = pneg %p70
        $region70: #{tpu_custom_call.1} parent=67 // pred_check_branch
          %394 = sbr.rel (%p392) target = $region72
        $region71: #{tpu_custom_call.1} parent=67 // pred_region
          %395 = dma.done [#allocation3], 128
        $region72: #{tpu_custom_call.1} parent=67 // pred_fallthru
          _
        // Predicated region
        $region73: #{tpu_custom_call.1} parent=67 // pred_check
          %p396 = pneg %p196
        $region74: #{tpu_custom_call.1} parent=67 // pred_check_branch
          %398 = sbr.rel (%p396) target = $region76
        $region75: #{tpu_custom_call.1} parent=67 // pred_region
          %399 = dma.done [#allocation6], 256
        $region76: #{tpu_custom_call.1} parent=67 // pred_fallthru
          _
        %p400 = scmp.lt.s32.totalorder %s28, 1
        %s401 = scalar_select %p400, %s28, 1
        %s402 = smul.addr %s401, 8
        %s403 = scalar_lea.vmem %s0, %s402
        %p404 = pneg %p49
        %p405 = pneg %p46
        %p406 = pneg %p70
        %p407 = pneg %p67
        %p408 = pneg %p91
        %p409 = pneg %p88
        %p410 = pneg %p112
        %p411 = pneg %p109
        %p412 = pneg %p133
        %p413 = pneg %p130
        %p414 = pneg %p154
        %p415 = pneg %p151
        %p416 = pneg %p175
        %p417 = pneg %p172
        %p418 = pneg %p196
        %p419 = pneg %p193
        %p420 = pneg %p217
        %p421 = pneg %p214
        %p422 = pneg %p238
        %p423 = pneg %p235
        %p424 = pneg %p259
        %p425 = pneg %p256
        %p426 = pneg %p280
        %p427 = pneg %p277
        %p428 = pneg %p306
        %p429 = pneg %p303
        %s430 = sand.u32 %s293, 1
        %s431 = scalar_lea.sflag [#allocation4], %s430
        %s432 = sand.u32 %s293, 1
        %s433 = smul.addr %s432, 8
        %s434 = scalar_lea.vmem [#allocation7], %s433
        %p435 = scmp.lt.s32.totalorder %s28, 1
        %s436 = scalar_select %p435, %s28, 1
        %s437 = smul.addr %s436, 8
        %s438 = scalar_lea.vmem %s0, %s437
        %v440 = vld [vmem:[%s8] sm:$0x1]
        %v441 = vld [vmem:[%s8 + $0x1] sm:$0x1]
        %v442 = vld [vmem:[%s8 + $0x2] sm:$0x1]
        %v443 = vld [vmem:[%s8 + $0x3] sm:$0x1]
        %v444 = vld [vmem:[%s8 + $0x4] sm:$0x1]
        %v445 = vld [vmem:[%s8 + $0x5] sm:$0x1]
        %v446 = vld [vmem:[%s8 + $0x6] sm:$0x1]
        %v447 = vld [vmem:[%s8 + $0x7] sm:$0x1]
        %v448 = vld [vmem:[%s438] sm:$0xff]
        %v449 = vpack.c.bf16 %v448, %v448
        %v450 = vld [vmem:[#allocation2] sm:$0xf]
        %v451 = vld [vmem:[#allocation2 + $0x4] sm:$0xf]
        %v452 = vlaneseq
        %v453 = vshrl.u32 %v452, 7
        %v454 = vsub.s32 0, %v453
        %v455 = vrot.slane %v440, %v454
        %v458 = vunpack.c.l.b16 %v450
        %v459 = vunpack.c.l.b16 %v451
        %v460 = vpack.c.b16 %v459, %v458
        %vm462 = vcmask 130048
        %v464 = vsel %vm462, %v449, 0
        %466 = vmatprep.subr.bf16.mxu0 0
        %467 = vmatpush1.bf16.msra.mxu0 %v460
        %468 = vmatprep.subr.bf16.mxu0 0
        %469 = vmatpush1.bf16.msra.mxu0 0
        %470 = vmatprep.subr.bf16.mxu0 0
        %471 = vmatpush1.bf16.msra.mxu0 0
        %472 = vmatprep.subr.bf16.mxu0 0
        %473 = vmatpush1.bf16.msra.mxu0 0
        %474 = vmatprep.subr.bf16.mxu0 0
        %475 = vmatpush1.bf16.msra.mxu0 0
        %476 = vmatprep.subr.bf16.mxu0 0
        %477 = vmatpush1.bf16.msra.mxu0 0
        %478 = vmatprep.subr.bf16.mxu0 0
        %479 = vmatpush1.bf16.msra.mxu0 0
        %480 = vmatprep.subr.bf16.mxu0 0
        %481 = vmatpush1.bf16.msra.mxu0 0
        %482 = vmatprep.subr.bf16.mxu0 0
        %483 = vmatpush1.bf16.msra.mxu0 0
        %484 = vmatprep.subr.bf16.mxu0 0
        %485 = vmatpush1.bf16.msra.mxu0 0
        %486 = vmatprep.subr.bf16.mxu0 0
        %487 = vmatpush1.bf16.msra.mxu0 0
        %488 = vmatprep.subr.bf16.mxu0 0
        %489 = vmatpush1.bf16.msra.mxu0 0
        %490 = vmatprep.subr.bf16.mxu0 0
        %491 = vmatpush1.bf16.msra.mxu0 0
        %492 = vmatprep.subr.bf16.mxu0 0
        %493 = vmatpush1.bf16.msra.mxu0 0
        %494 = vmatprep.subr.bf16.mxu0 0
        %495 = vmatpush1.bf16.msra.mxu0 0
        %496 = vmatprep.subr.bf16.mxu0 0
        %497 = vmatpush1.bf16.msra.mxu0 0
        %498 = vmatprep.mubr.bf16.mxu0 0
        %499 = vmatmul.mubr.bf16.gmra.mrb[0].mxu0 %v464
        %v500 = vpop.f32.mrb[0].mxu0
        %v501 = vadd.f32 %v455, %v500
        %v502 = vpop.f32.mrb[0].mxu0
        %v503 = vpop.f32.mrb[0].mxu0
        %v504 = vpop.f32.mrb[0].mxu0
        %505 = vdwg.mxu0
        %v506 = vpack.c.bf16 %v501, %v501
        %v507 = vld [vmem:[%s2] sm:$0xf]
        %v508 = vld [vmem:[%s2 + $0x4] sm:$0xf]
        %v509 = vld [vmem:[%s2 + $0x8] sm:$0xf]
        %v510 = vld [vmem:[%s2 + $0xc] sm:$0xf]
        %v511 = vld [vmem:[%s9] sm:$0x1]
        %v513 = vlaneseq
        %v514 = vshrl.u32 %v513, 7
        %v515 = vsub.s32 0, %v514
        %v516 = vrot.slane %v511, %v515
        %v522 = vunpack.c.l.b16 %v507
        %v523 = vunpack.c.l.b16 %v508
        %v524 = vunpack.c.l.b16 %v509
        %v525 = vunpack.c.l.b16 %v510
        %v526 = vpack.c.b16 %v523, %v522
        %v527 = vpack.c.b16 %v525, %v524
        %vm530 = vcmask 261120
        %v532 = vsel %vm530, %v506, 0
        %534 = vmatprep.subr.bf16.mxu0 0
        %535 = vmatpush1.bf16.msra.mxu0 %v526
        %536 = vmatprep.subr.bf16.mxu0 0
        %537 = vmatpush1.bf16.msra.mxu0 %v527
        %538 = vmatprep.subr.bf16.mxu0 0
        %539 = vmatpush1.bf16.msra.mxu0 0
        %540 = vmatprep.subr.bf16.mxu0 0
        %541 = vmatpush1.bf16.msra.mxu0 0
        %542 = vmatprep.subr.bf16.mxu0 0
        %543 = vmatpush1.bf16.msra.mxu0 0
        %544 = vmatprep.subr.bf16.mxu0 0
        %545 = vmatpush1.bf16.msra.mxu0 0
        %546 = vmatprep.subr.bf16.mxu0 0
        %547 = vmatpush1.bf16.msra.mxu0 0
        %548 = vmatprep.subr.bf16.mxu0 0
        %549 = vmatpush1.bf16.msra.mxu0 0
        %550 = vmatprep.subr.bf16.mxu0 0
        %551 = vmatpush1.bf16.msra.mxu0 0
        %552 = vmatprep.subr.bf16.mxu0 0
        %553 = vmatpush1.bf16.msra.mxu0 0
        %554 = vmatprep.subr.bf16.mxu0 0
        %555 = vmatpush1.bf16.msra.mxu0 0
        %556 = vmatprep.subr.bf16.mxu0 0
        %557 = vmatpush1.bf16.msra.mxu0 0
        %558 = vmatprep.subr.bf16.mxu0 0
        %559 = vmatpush1.bf16.msra.mxu0 0
        %560 = vmatprep.subr.bf16.mxu0 0
        %561 = vmatpush1.bf16.msra.mxu0 0
        %562 = vmatprep.subr.bf16.mxu0 0
        %563 = vmatpush1.bf16.msra.mxu0 0
        %564 = vmatprep.subr.bf16.mxu0 0
        %565 = vmatpush1.bf16.msra.mxu0 0
        %566 = vmatprep.mubr.bf16.mxu0 0
        %567 = vmatmul.mubr.bf16.gmra.mrb[0].mxu0 %v532
        %v568 = vpop.f32.mrb[0].mxu0
        %v569 = vadd.f32 %v516, %v568
        %v570 = vpop.f32.mrb[0].mxu0
        %v571 = vpop.f32.mrb[0].mxu0
        %v572 = vpop.f32.mrb[0].mxu0
        %573 = vdwg.mxu0
        %575 = vrot.lane.b32.xlu0 %v569, 96
        %v576 = vpop.permute.xlu0 %575
        %vm577 = vcmask 64512
        %v578 = vsel %vm577, %v569, 0
        %v580 = vsel %vm577, %v576, 0
        %582 = vmatprep.subr.mxu0 0.0
        %583 = vmatpush1.xpose.msra.mxu0 %v580
        %584 = vmatprep.subr.mxu0 0.0
        %585 = vmatpush1.xpose.msra.mxu0 0.0
        %586 = vmatprep.subr.mxu0 0.0
        %587 = vmatpush1.xpose.msra.mxu0 0.0
        %588 = vmatprep.subr.mxu0 0.0
        %589 = vmatpush1.xpose.msra.mxu0 0.0
        %590 = vmatprep.subr.mxu0 0.0
        %591 = vmatpush1.xpose.msra.mxu0 0.0
        %592 = vmatprep.subr.mxu0 0.0
        %593 = vmatpush1.xpose.msra.mxu0 0.0
        %594 = vmatprep.subr.mxu0 0.0
        %595 = vmatpush1.xpose.msra.mxu0 0.0
        %596 = vmatprep.subr.mxu0 0.0
        %597 = vmatpush1.xpose.msra.mxu0 0.0
        %598 = vmatprep.subr.mxu0 0.0
        %599 = vmatpush1.xpose.msra.mxu0 0.0
        %600 = vmatprep.subr.mxu0 0.0
        %601 = vmatpush1.xpose.msra.mxu0 0.0
        %602 = vmatprep.subr.mxu0 0.0
        %603 = vmatpush1.xpose.msra.mxu0 0.0
        %604 = vmatprep.subr.mxu0 0.0
        %605 = vmatpush1.xpose.msra.mxu0 0.0
        %606 = vmatprep.subr.mxu0 0.0
        %607 = vmatpush1.xpose.msra.mxu0 0.0
        %608 = vmatprep.subr.mxu0 0.0
        %609 = vmatpush1.xpose.msra.mxu0 0.0
        %610 = vmatprep.subr.mxu0 0.0
        %611 = vmatpush1.xpose.msra.mxu0 0.0
        %612 = vmatprep.subr.mxu0 0.0
        %613 = vmatpush1.xpose.msra.mxu0 0.0
        %614 = vmatprep.subr.mxu0 0.0
        %615 = vmatpush1.xpose.msra.mxu0 0.0
        %616 = vmatprep.subr.mxu0 0.0
        %617 = vmatpush1.xpose.msra.mxu0 0.0
        %618 = vmatprep.subr.mxu0 0.0
        %619 = vmatpush1.xpose.msra.mxu0 0.0
        %620 = vmatprep.subr.mxu0 0.0
        %621 = vmatpush1.xpose.msra.mxu0 0.0
        %622 = vmatprep.subr.mxu0 0.0
        %623 = vmatpush1.xpose.msra.mxu0 0.0
        %624 = vmatprep.subr.mxu0 0.0
        %625 = vmatpush1.xpose.msra.mxu0 0.0
        %626 = vmatprep.subr.mxu0 0.0
        %627 = vmatpush1.xpose.msra.mxu0 0.0
        %628 = vmatprep.subr.mxu0 0.0
        %629 = vmatpush1.xpose.msra.mxu0 0.0
        %630 = vmatprep.subr.mxu0 0.0
        %631 = vmatpush1.xpose.msra.mxu0 0.0
        %632 = vmatprep.subr.mxu0 0.0
        %633 = vmatpush1.xpose.msra.mxu0 0.0
        %634 = vmatprep.subr.mxu0 0.0
        %635 = vmatpush1.xpose.msra.mxu0 0.0
        %636 = vmatprep.subr.mxu0 0.0
        %637 = vmatpush1.xpose.msra.mxu0 0.0
        %638 = vmatprep.subr.mxu0 0.0
        %639 = vmatpush1.xpose.msra.mxu0 0.0
        %640 = vmatprep.subr.mxu0 0.0
        %641 = vmatpush1.xpose.msra.mxu0 0.0
        %642 = vmatprep.subr.mxu0 0.0
        %643 = vmatpush1.xpose.msra.mxu0 0.0
        %644 = vmatprep.subr.mxu0 0.0
        %645 = vmatpush1.xpose.msra.mxu0 0.0
        %646 = vmatprep.mubr.f32.mxu0 0.0
        %647 = vmatmul.mubr.f32.gmra.mrb[0].mxu0 %v578
        %v648 = vpop.f32.mrb[0].mxu0
        %v649 = vadd.f32 0.0, %v648
        %v650 = vpop.f32.mrb[0].mxu0
        %651 = vdwg.mxu0
        %v652 = vsel %vm577, %v649, -inf
        %653 = vmax.xlane.f32.xlu0 %v652
        %v654 = vpop.xlane.xlu0 %653
        %v655 = vsub.f32 %v649, %v654
        %v656 = vmul.f32 %v655, 1.442695
        %v657 = vpow.pop %v656
        %v658 = vsel %vm577, %v657, 0.0
        %659 = vadd.xlane.f32.xlu0 %v658
        %v660 = vpop.xlane.xlu0 %659
        %v661 = vrcp.pop %v660
        %v662 = vmul.f32 %v657, %v661
        %663 = vrot.lane.b32.xlu0 %v569, 64
        %v664 = vpop.permute.xlu0 %663
        %v667 = vsel %vm577, %v662, 0
        %669 = vmatprep.subr.mxu0 0.0
        %670 = vmatpush1.msra.mxu0 %v664
        %671 = vmatprep.subr.mxu0 0.0
        %672 = vmatpush1.msra.mxu0 0.0
        %673 = vmatprep.subr.mxu0 0.0
        %674 = vmatpush1.msra.mxu0 0.0
        %675 = vmatprep.subr.mxu0 0.0
        %676 = vmatpush1.msra.mxu0 0.0
        %677 = vmatprep.subr.mxu0 0.0
        %678 = vmatpush1.msra.mxu0 0.0
        %679 = vmatprep.subr.mxu0 0.0
        %680 = vmatpush1.msra.mxu0 0.0
        %681 = vmatprep.subr.mxu0 0.0
        %682 = vmatpush1.msra.mxu0 0.0
        %683 = vmatprep.subr.mxu0 0.0
        %684 = vmatpush1.msra.mxu0 0.0
        %685 = vmatprep.subr.mxu0 0.0
        %686 = vmatpush1.msra.mxu0 0.0
        %687 = vmatprep.subr.mxu0 0.0
        %688 = vmatpush1.msra.mxu0 0.0
        %689 = vmatprep.subr.mxu0 0.0
        %690 = vmatpush1.msra.mxu0 0.0
        %691 = vmatprep.subr.mxu0 0.0
        %692 = vmatpush1.msra.mxu0 0.0
        %693 = vmatprep.subr.mxu0 0.0
        %694 = vmatpush1.msra.mxu0 0.0
        %695 = vmatprep.subr.mxu0 0.0
        %696 = vmatpush1.msra.mxu0 0.0
        %697 = vmatprep.subr.mxu0 0.0
        %698 = vmatpush1.msra.mxu0 0.0
        %699 = vmatprep.subr.mxu0 0.0
        %700 = vmatpush1.msra.mxu0 0.0
        %701 = vmatprep.subr.mxu0 0.0
        %702 = vmatpush1.msra.mxu0 0.0
        %703 = vmatprep.subr.mxu0 0.0
        %704 = vmatpush1.msra.mxu0 0.0
        %705 = vmatprep.subr.mxu0 0.0
        %706 = vmatpush1.msra.mxu0 0.0
        %707 = vmatprep.subr.mxu0 0.0
        %708 = vmatpush1.msra.mxu0 0.0
        %709 = vmatprep.subr.mxu0 0.0
        %710 = vmatpush1.msra.mxu0 0.0
        %711 = vmatprep.subr.mxu0 0.0
        %712 = vmatpush1.msra.mxu0 0.0
        %713 = vmatprep.subr.mxu0 0.0
        %714 = vmatpush1.msra.mxu0 0.0
        %715 = vmatprep.subr.mxu0 0.0
        %716 = vmatpush1.msra.mxu0 0.0
        %717 = vmatprep.subr.mxu0 0.0
        %718 = vmatpush1.msra.mxu0 0.0
        %719 = vmatprep.subr.mxu0 0.0
        %720 = vmatpush1.msra.mxu0 0.0
        %721 = vmatprep.subr.mxu0 0.0
        %722 = vmatpush1.msra.mxu0 0.0
        %723 = vmatprep.subr.mxu0 0.0
        %724 = vmatpush1.msra.mxu0 0.0
        %725 = vmatprep.subr.mxu0 0.0
        %726 = vmatpush1.msra.mxu0 0.0
        %727 = vmatprep.subr.mxu0 0.0
        %728 = vmatpush1.msra.mxu0 0.0
        %729 = vmatprep.subr.mxu0 0.0
        %730 = vmatpush1.msra.mxu0 0.0
        %731 = vmatprep.subr.mxu0 0.0
        %732 = vmatpush1.msra.mxu0 0.0
        %733 = vmatprep.mubr.f32.mxu0 0.0
        %734 = vmatmul.mubr.f32.gmra.mrb[0].mxu0 %v667
        %v735 = vpop.f32.mrb[0].mxu0
        %v736 = vadd.f32 0.0, %v735
        %v737 = vpop.f32.mrb[0].mxu0
        %738 = vdwg.mxu0
        %v739 = vpack.c.bf16 %v736, %v736
        %v740 = vld [vmem:[%s3] sm:$0xf]
        %741 = vrot.lane.b32.xlu0 %v569, 120
        %v742 = vpop.permute.xlu0 %741
        %743 = vrot.lane.b32.xlu0 %v569, 88
        %v744 = vpop.permute.xlu0 %743
        %v745 = vsel %vm577, %v742, 0
        %v747 = vsel %vm577, %v744, 0
        %749 = vmatprep.subr.mxu0 0.0
        %750 = vmatpush1.xpose.msra.mxu0 %v747
        %751 = vmatprep.subr.mxu0 0.0
        %752 = vmatpush1.xpose.msra.mxu0 0.0
        %753 = vmatprep.subr.mxu0 0.0
        %754 = vmatpush1.xpose.msra.mxu0 0.0
        %755 = vmatprep.subr.mxu0 0.0
        %756 = vmatpush1.xpose.msra.mxu0 0.0
        %757 = vmatprep.subr.mxu0 0.0
        %758 = vmatpush1.xpose.msra.mxu0 0.0
        %759 = vmatprep.subr.mxu0 0.0
        %760 = vmatpush1.xpose.msra.mxu0 0.0
        %761 = vmatprep.subr.mxu0 0.0
        %762 = vmatpush1.xpose.msra.mxu0 0.0
        %763 = vmatprep.subr.mxu0 0.0
        %764 = vmatpush1.xpose.msra.mxu0 0.0
        %765 = vmatprep.subr.mxu0 0.0
        %766 = vmatpush1.xpose.msra.mxu0 0.0
        %767 = vmatprep.subr.mxu0 0.0
        %768 = vmatpush1.xpose.msra.mxu0 0.0
        %769 = vmatprep.subr.mxu0 0.0
        %770 = vmatpush1.xpose.msra.mxu0 0.0
        %771 = vmatprep.subr.mxu0 0.0
        %772 = vmatpush1.xpose.msra.mxu0 0.0
        %773 = vmatprep.subr.mxu0 0.0
        %774 = vmatpush1.xpose.msra.mxu0 0.0
        %775 = vmatprep.subr.mxu0 0.0
        %776 = vmatpush1.xpose.msra.mxu0 0.0
        %777 = vmatprep.subr.mxu0 0.0
        %778 = vmatpush1.xpose.msra.mxu0 0.0
        %779 = vmatprep.subr.mxu0 0.0
        %780 = vmatpush1.xpose.msra.mxu0 0.0
        %781 = vmatprep.subr.mxu0 0.0
        %782 = vmatpush1.xpose.msra.mxu0 0.0
        %783 = vmatprep.subr.mxu0 0.0
        %784 = vmatpush1.xpose.msra.mxu0 0.0
        %785 = vmatprep.subr.mxu0 0.0
        %786 = vmatpush1.xpose.msra.mxu0 0.0
        %787 = vmatprep.subr.mxu0 0.0
        %788 = vmatpush1.xpose.msra.mxu0 0.0
        %789 = vmatprep.subr.mxu0 0.0
        %790 = vmatpush1.xpose.msra.mxu0 0.0
        %791 = vmatprep.subr.mxu0 0.0
        %792 = vmatpush1.xpose.msra.mxu0 0.0
        %793 = vmatprep.subr.mxu0 0.0
        %794 = vmatpush1.xpose.msra.mxu0 0.0
        %795 = vmatprep.subr.mxu0 0.0
        %796 = vmatpush1.xpose.msra.mxu0 0.0
        %797 = vmatprep.subr.mxu0 0.0
        %798 = vmatpush1.xpose.msra.mxu0 0.0
        %799 = vmatprep.subr.mxu0 0.0
        %800 = vmatpush1.xpose.msra.mxu0 0.0
        %801 = vmatprep.subr.mxu0 0.0
        %802 = vmatpush1.xpose.msra.mxu0 0.0
        %803 = vmatprep.subr.mxu0 0.0
        %804 = vmatpush1.xpose.msra.mxu0 0.0
        %805 = vmatprep.subr.mxu0 0.0
        %806 = vmatpush1.xpose.msra.mxu0 0.0
        %807 = vmatprep.subr.mxu0 0.0
        %808 = vmatpush1.xpose.msra.mxu0 0.0
        %809 = vmatprep.subr.mxu0 0.0
        %810 = vmatpush1.xpose.msra.mxu0 0.0
        %811 = vmatprep.subr.mxu0 0.0
        %812 = vmatpush1.xpose.msra.mxu0 0.0
        %813 = vmatprep.mubr.f32.mxu0 0.0
        %814 = vmatmul.mubr.f32.gmra.mrb[0].mxu0 %v745
        %v815 = vpop.f32.mrb[0].mxu0
        %v816 = vadd.f32 0.0, %v815
        %v817 = vpop.f32.mrb[0].mxu0
        %818 = vdwg.mxu0
        %v819 = vsel %vm577, %v816, -inf
        %820 = vmax.xlane.f32.xlu0 %v819
        %v821 = vpop.xlane.xlu0 %820
        %v822 = vsub.f32 %v816, %v821
        %v823 = vmul.f32 %v822, 1.442695
        %v824 = vpow.pop %v823
        %v825 = vsel %vm577, %v824, 0.0
        %826 = vadd.xlane.f32.xlu0 %v825
        %v827 = vpop.xlane.xlu0 %826
        %v828 = vrcp.pop %v827
        %v829 = vmul.f32 %v824, %v828
        %830 = vrot.lane.b32.xlu0 %v569, 56
        %v831 = vpop.permute.xlu0 %830
        %v834 = vsel %vm577, %v829, 0
        %836 = vmatprep.subr.mxu0 0.0
        %837 = vmatpush1.msra.mxu0 %v831
        %838 = vmatprep.subr.mxu0 0.0
        %839 = vmatpush1.msra.mxu0 0.0
        %840 = vmatprep.subr.mxu0 0.0
        %841 = vmatpush1.msra.mxu0 0.0
        %842 = vmatprep.subr.mxu0 0.0
        %843 = vmatpush1.msra.mxu0 0.0
        %844 = vmatprep.subr.mxu0 0.0
        %845 = vmatpush1.msra.mxu0 0.0
        %846 = vmatprep.subr.mxu0 0.0
        %847 = vmatpush1.msra.mxu0 0.0
        %848 = vmatprep.subr.mxu0 0.0
        %849 = vmatpush1.msra.mxu0 0.0
        %850 = vmatprep.subr.mxu0 0.0
        %851 = vmatpush1.msra.mxu0 0.0
        %852 = vmatprep.subr.mxu0 0.0
        %853 = vmatpush1.msra.mxu0 0.0
        %854 = vmatprep.subr.mxu0 0.0
        %855 = vmatpush1.msra.mxu0 0.0
        %856 = vmatprep.subr.mxu0 0.0
        %857 = vmatpush1.msra.mxu0 0.0
        %858 = vmatprep.subr.mxu0 0.0
        %859 = vmatpush1.msra.mxu0 0.0
        %860 = vmatprep.subr.mxu0 0.0
        %861 = vmatpush1.msra.mxu0 0.0
        %862 = vmatprep.subr.mxu0 0.0
        %863 = vmatpush1.msra.mxu0 0.0
        %864 = vmatprep.subr.mxu0 0.0
        %865 = vmatpush1.msra.mxu0 0.0
        %866 = vmatprep.subr.mxu0 0.0
        %867 = vmatpush1.msra.mxu0 0.0
        %868 = vmatprep.subr.mxu0 0.0
        %869 = vmatpush1.msra.mxu0 0.0
        %870 = vmatprep.subr.mxu0 0.0
        %871 = vmatpush1.msra.mxu0 0.0
        %872 = vmatprep.subr.mxu0 0.0
        %873 = vmatpush1.msra.mxu0 0.0
        %874 = vmatprep.subr.mxu0 0.0
        %875 = vmatpush1.msra.mxu0 0.0
        %876 = vmatprep.subr.mxu0 0.0
        %877 = vmatpush1.msra.mxu0 0.0
        %878 = vmatprep.subr.mxu0 0.0
        %879 = vmatpush1.msra.mxu0 0.0
        %880 = vmatprep.subr.mxu0 0.0
        %881 = vmatpush1.msra.mxu0 0.0
        %882 = vmatprep.subr.mxu0 0.0
        %883 = vmatpush1.msra.mxu0 0.0
        %884 = vmatprep.subr.mxu0 0.0
        %885 = vmatpush1.msra.mxu0 0.0
        %886 = vmatprep.subr.mxu0 0.0
        %887 = vmatpush1.msra.mxu0 0.0
        %888 = vmatprep.subr.mxu0 0.0
        %889 = vmatpush1.msra.mxu0 0.0
        %890 = vmatprep.subr.mxu0 0.0
        %891 = vmatpush1.msra.mxu0 0.0
        %892 = vmatprep.subr.mxu0 0.0
        %893 = vmatpush1.msra.mxu0 0.0
        %894 = vmatprep.subr.mxu0 0.0
        %895 = vmatpush1.msra.mxu0 0.0
        %896 = vmatprep.subr.mxu0 0.0
        %897 = vmatpush1.msra.mxu0 0.0
        %898 = vmatprep.subr.mxu0 0.0
        %899 = vmatpush1.msra.mxu0 0.0
        %900 = vmatprep.mubr.f32.mxu0 0.0
        %901 = vmatmul.mubr.f32.gmra.mrb[0].mxu0 %v834
        %v902 = vpop.f32.mrb[0].mxu0
        %v903 = vadd.f32 0.0, %v902
        %v904 = vpop.f32.mrb[0].mxu0
        %905 = vdwg.mxu0
        %v906 = vpack.c.bf16 %v903, %v903
        %s907 = scalar_lea.vmem %s3, 4
        %v908 = vld [vmem:[%s907] sm:$0xf]
        %v910 = vsel %vm577, %v906, 0
        %vm912 = vcmask 1043456
        %v914 = vsel %vm912, %v908, 0
        %916 = vmatprep.subr.bf16.mxu0 0
        %917 = vmatpush1.bf16.msra.mxu0 %v914
        %918 = vmatprep.subr.bf16.mxu0 0
        %919 = vmatpush1.bf16.msra.mxu0 0
        %920 = vmatprep.subr.bf16.mxu0 0
        %921 = vmatpush1.bf16.msra.mxu0 0
        %922 = vmatprep.subr.bf16.mxu0 0
        %923 = vmatpush1.bf16.msra.mxu0 0
        %924 = vmatprep.subr.bf16.mxu0 0
        %925 = vmatpush1.bf16.msra.mxu0 0
        %926 = vmatprep.subr.bf16.mxu0 0
        %927 = vmatpush1.bf16.msra.mxu0 0
        %928 = vmatprep.subr.bf16.mxu0 0
        %929 = vmatpush1.bf16.msra.mxu0 0
        %930 = vmatprep.subr.bf16.mxu0 0
        %931 = vmatpush1.bf16.msra.mxu0 0
        %932 = vmatprep.subr.bf16.mxu0 0
        %933 = vmatpush1.bf16.msra.mxu0 0
        %934 = vmatprep.subr.bf16.mxu0 0
        %935 = vmatpush1.bf16.msra.mxu0 0
        %936 = vmatprep.subr.bf16.mxu0 0
        %937 = vmatpush1.bf16.msra.mxu0 0
        %938 = vmatprep.subr.bf16.mxu0 0
        %939 = vmatpush1.bf16.msra.mxu0 0
        %940 = vmatprep.subr.bf16.mxu0 0
        %941 = vmatpush1.bf16.msra.mxu0 0
        %942 = vmatprep.subr.bf16.mxu0 0
        %943 = vmatpush1.bf16.msra.mxu0 0
        %944 = vmatprep.subr.bf16.mxu0 0
        %945 = vmatpush1.bf16.msra.mxu0 0
        %946 = vmatprep.subr.bf16.mxu0 0
        %947 = vmatpush1.bf16.msra.mxu0 0
        %948 = vmatprep.mubr.bf16.mxu0 0
        %949 = vmatmul.mubr.bf16.gmra.mrb[0].mxu0 %v910
        %v950 = vpop.f32.mrb[0].mxu0
        %v951 = vadd.f32 0.0, %v950
        %v952 = vpop.f32.mrb[0].mxu0
        %v953 = vpop.f32.mrb[0].mxu0
        %v954 = vpop.f32.mrb[0].mxu0
        %955 = vdwg.mxu0
        %v957 = vsel %vm577, %v739, 0
        %v960 = vsel %vm912, %v740, 0
        %962 = vmatprep.subr.bf16.mxu0 0
        %963 = vmatpush1.bf16.msra.mxu0 %v960
        %964 = vmatprep.subr.bf16.mxu0 0
        %965 = vmatpush1.bf16.msra.mxu0 0
        %966 = vmatprep.subr.bf16.mxu0 0
        %967 = vmatpush1.bf16.msra.mxu0 0
        %968 = vmatprep.subr.bf16.mxu0 0
        %969 = vmatpush1.bf16.msra.mxu0 0
        %970 = vmatprep.subr.bf16.mxu0 0
        %971 = vmatpush1.bf16.msra.mxu0 0
        %972 = vmatprep.subr.bf16.mxu0 0
        %973 = vmatpush1.bf16.msra.mxu0 0
        %974 = vmatprep.subr.bf16.mxu0 0
        %975 = vmatpush1.bf16.msra.mxu0 0
        %976 = vmatprep.subr.bf16.mxu0 0
        %977 = vmatpush1.bf16.msra.mxu0 0
        %978 = vmatprep.subr.bf16.mxu0 0
        %979 = vmatpush1.bf16.msra.mxu0 0
        %980 = vmatprep.subr.bf16.mxu0 0
        %981 = vmatpush1.bf16.msra.mxu0 0
        %982 = vmatprep.subr.bf16.mxu0 0
        %983 = vmatpush1.bf16.msra.mxu0 0
        %984 = vmatprep.subr.bf16.mxu0 0
        %985 = vmatpush1.bf16.msra.mxu0 0
        %986 = vmatprep.subr.bf16.mxu0 0
        %987 = vmatpush1.bf16.msra.mxu0 0
        %988 = vmatprep.subr.bf16.mxu0 0
        %989 = vmatpush1.bf16.msra.mxu0 0
        %990 = vmatprep.subr.bf16.mxu0 0
        %991 = vmatpush1.bf16.msra.mxu0 0
        %992 = vmatprep.subr.bf16.mxu0 0
        %993 = vmatpush1.bf16.msra.mxu0 0
        %994 = vmatprep.mubr.bf16.mxu0 0
        %995 = vmatmul.mubr.bf16.gmra.mrb[0].mxu0 %v957
        %v996 = vpop.f32.mrb[0].mxu0
        %v997 = vadd.f32 %v951, %v996
        %v998 = vpop.f32.mrb[0].mxu0
        %v999 = vpop.f32.mrb[0].mxu0
        %v1000 = vpop.f32.mrb[0].mxu0
        %1001 = vdwg.mxu0
        %1002 = vrot.lane.b32.xlu0 %v569, 112
        %v1003 = vpop.permute.xlu0 %1002
        %1004 = vrot.lane.b32.xlu0 %v569, 80
        %v1005 = vpop.permute.xlu0 %1004
        %v1006 = vsel %vm577, %v1003, 0
        %v1008 = vsel %vm577, %v1005, 0
        %1010 = vmatprep.subr.mxu0 0.0
        %1011 = vmatpush1.xpose.msra.mxu0 %v1008
        %1012 = vmatprep.subr.mxu0 0.0
        %1013 = vmatpush1.xpose.msra.mxu0 0.0
        %1014 = vmatprep.subr.mxu0 0.0
        %1015 = vmatpush1.xpose.msra.mxu0 0.0
        %1016 = vmatprep.subr.mxu0 0.0
        %1017 = vmatpush1.xpose.msra.mxu0 0.0
        %1018 = vmatprep.subr.mxu0 0.0
        %1019 = vmatpush1.xpose.msra.mxu0 0.0
        %1020 = vmatprep.subr.mxu0 0.0
        %1021 = vmatpush1.xpose.msra.mxu0 0.0
        %1022 = vmatprep.subr.mxu0 0.0
        %1023 = vmatpush1.xpose.msra.mxu0 0.0
        %1024 = vmatprep.subr.mxu0 0.0
        %1025 = vmatpush1.xpose.msra.mxu0 0.0
        %1026 = vmatprep.subr.mxu0 0.0
        %1027 = vmatpush1.xpose.msra.mxu0 0.0
        %1028 = vmatprep.subr.mxu0 0.0
        %1029 = vmatpush1.xpose.msra.mxu0 0.0
        %1030 = vmatprep.subr.mxu0 0.0
        %1031 = vmatpush1.xpose.msra.mxu0 0.0
        %1032 = vmatprep.subr.mxu0 0.0
        %1033 = vmatpush1.xpose.msra.mxu0 0.0
        %1034 = vmatprep.subr.mxu0 0.0
        %1035 = vmatpush1.xpose.msra.mxu0 0.0
        %1036 = vmatprep.subr.mxu0 0.0
        %1037 = vmatpush1.xpose.msra.mxu0 0.0
        %1038 = vmatprep.subr.mxu0 0.0
        %1039 = vmatpush1.xpose.msra.mxu0 0.0
        %1040 = vmatprep.subr.mxu0 0.0
        %1041 = vmatpush1.xpose.msra.mxu0 0.0
        %1042 = vmatprep.subr.mxu0 0.0
        %1043 = vmatpush1.xpose.msra.mxu0 0.0
        %1044 = vmatprep.subr.mxu0 0.0
        %1045 = vmatpush1.xpose.msra.mxu0 0.0
        %1046 = vmatprep.subr.mxu0 0.0
        %1047 = vmatpush1.xpose.msra.mxu0 0.0
        %1048 = vmatprep.subr.mxu0 0.0
        %1049 = vmatpush1.xpose.msra.mxu0 0.0
        %1050 = vmatprep.subr.mxu0 0.0
        %1051 = vmatpush1.xpose.msra.mxu0 0.0
        %1052 = vmatprep.subr.mxu0 0.0
        %1053 = vmatpush1.xpose.msra.mxu0 0.0
        %1054 = vmatprep.subr.mxu0 0.0
        %1055 = vmatpush1.xpose.msra.mxu0 0.0
        %1056 = vmatprep.subr.mxu0 0.0
        %1057 = vmatpush1.xpose.msra.mxu0 0.0
        %1058 = vmatprep.subr.mxu0 0.0
        %1059 = vmatpush1.xpose.msra.mxu0 0.0
        %1060 = vmatprep.subr.mxu0 0.0
        %1061 = vmatpush1.xpose.msra.mxu0 0.0
        %1062 = vmatprep.subr.mxu0 0.0
        %1063 = vmatpush1.xpose.msra.mxu0 0.0
        %1064 = vmatprep.subr.mxu0 0.0
        %1065 = vmatpush1.xpose.msra.mxu0 0.0
        %1066 = vmatprep.subr.mxu0 0.0
        %1067 = vmatpush1.xpose.msra.mxu0 0.0
        %1068 = vmatprep.subr.mxu0 0.0
        %1069 = vmatpush1.xpose.msra.mxu0 0.0
        %1070 = vmatprep.subr.mxu0 0.0
        %1071 = vmatpush1.xpose.msra.mxu0 0.0
        %1072 = vmatprep.subr.mxu0 0.0
        %1073 = vmatpush1.xpose.msra.mxu0 0.0
        %1074 = vmatprep.mubr.f32.mxu0 0.0
        %1075 = vmatmul.mubr.f32.gmra.mrb[0].mxu0 %v1006
        %v1076 = vpop.f32.mrb[0].mxu0
        %v1077 = vadd.f32 0.0, %v1076
        %v1078 = vpop.f32.mrb[0].mxu0
        %1079 = vdwg.mxu0
        %v1080 = vsel %vm577, %v1077, -inf
        %1081 = vmax.xlane.f32.xlu0 %v1080
        %v1082 = vpop.xlane.xlu0 %1081
        %v1083 = vsub.f32 %v1077, %v1082
        %v1084 = vmul.f32 %v1083, 1.442695
        %v1085 = vpow.pop %v1084
        %v1086 = vsel %vm577, %v1085, 0.0
        %1087 = vadd.xlane.f32.xlu0 %v1086
        %v1088 = vpop.xlane.xlu0 %1087
        %v1089 = vrcp.pop %v1088
        %v1090 = vmul.f32 %v1085, %v1089
        %1091 = vrot.lane.b32.xlu0 %v569, 48
        %v1092 = vpop.permute.xlu0 %1091
        %v1095 = vsel %vm577, %v1090, 0
        %1097 = vmatprep.subr.mxu0 0.0
        %1098 = vmatpush1.msra.mxu0 %v1092
        %1099 = vmatprep.subr.mxu0 0.0
        %1100 = vmatpush1.msra.mxu0 0.0
        %1101 = vmatprep.subr.mxu0 0.0
        %1102 = vmatpush1.msra.mxu0 0.0
        %1103 = vmatprep.subr.mxu0 0.0
        %1104 = vmatpush1.msra.mxu0 0.0
        %1105 = vmatprep.subr.mxu0 0.0
        %1106 = vmatpush1.msra.mxu0 0.0
        %1107 = vmatprep.subr.mxu0 0.0
        %1108 = vmatpush1.msra.mxu0 0.0
        %1109 = vmatprep.subr.mxu0 0.0
        %1110 = vmatpush1.msra.mxu0 0.0
        %1111 = vmatprep.subr.mxu0 0.0
        %1112 = vmatpush1.msra.mxu0 0.0
        %1113 = vmatprep.subr.mxu0 0.0
        %1114 = vmatpush1.msra.mxu0 0.0
        %1115 = vmatprep.subr.mxu0 0.0
        %1116 = vmatpush1.msra.mxu0 0.0
        %1117 = vmatprep.subr.mxu0 0.0
        %1118 = vmatpush1.msra.mxu0 0.0
        %1119 = vmatprep.subr.mxu0 0.0
        %1120 = vmatpush1.msra.mxu0 0.0
        %1121 = vmatprep.subr.mxu0 0.0
        %1122 = vmatpush1.msra.mxu0 0.0
        %1123 = vmatprep.subr.mxu0 0.0
        %1124 = vmatpush1.msra.mxu0 0.0
        %1125 = vmatprep.subr.mxu0 0.0
        %1126 = vmatpush1.msra.mxu0 0.0
        %1127 = vmatprep.subr.mxu0 0.0
        %1128 = vmatpush1.msra.mxu0 0.0
        %1129 = vmatprep.subr.mxu0 0.0
        %1130 = vmatpush1.msra.mxu0 0.0
        %1131 = vmatprep.subr.mxu0 0.0
        %1132 = vmatpush1.msra.mxu0 0.0
        %1133 = vmatprep.subr.mxu0 0.0
        %1134 = vmatpush1.msra.mxu0 0.0
        %1135 = vmatprep.subr.mxu0 0.0
        %1136 = vmatpush1.msra.mxu0 0.0
        %1137 = vmatprep.subr.mxu0 0.0
        %1138 = vmatpush1.msra.mxu0 0.0
        %1139 = vmatprep.subr.mxu0 0.0
        %1140 = vmatpush1.msra.mxu0 0.0
        %1141 = vmatprep.subr.mxu0 0.0
        %1142 = vmatpush1.msra.mxu0 0.0
        %1143 = vmatprep.subr.mxu0 0.0
        %1144 = vmatpush1.msra.mxu0 0.0
        %1145 = vmatprep.subr.mxu0 0.0
        %1146 = vmatpush1.msra.mxu0 0.0
        %1147 = vmatprep.subr.mxu0 0.0
        %1148 = vmatpush1.msra.mxu0 0.0
        %1149 = vmatprep.subr.mxu0 0.0
        %1150 = vmatpush1.msra.mxu0 0.0
        %1151 = vmatprep.subr.mxu0 0.0
        %1152 = vmatpush1.msra.mxu0 0.0
        %1153 = vmatprep.subr.mxu0 0.0
        %1154 = vmatpush1.msra.mxu0 0.0
        %1155 = vmatprep.subr.mxu0 0.0
        %1156 = vmatpush1.msra.mxu0 0.0
        %1157 = vmatprep.subr.mxu0 0.0
        %1158 = vmatpush1.msra.mxu0 0.0
        %1159 = vmatprep.subr.mxu0 0.0
        %1160 = vmatpush1.msra.mxu0 0.0
        %1161 = vmatprep.mubr.f32.mxu0 0.0
        %1162 = vmatmul.mubr.f32.gmra.mrb[0].mxu0 %v1095
        %v1163 = vpop.f32.mrb[0].mxu0
        %v1164 = vadd.f32 0.0, %v1163
        %v1165 = vpop.f32.mrb[0].mxu0
        %1166 = vdwg.mxu0
        %v1167 = vpack.c.bf16 %v1164, %v1164
        %s1168 = scalar_lea.vmem %s3, 8
        %v1169 = vld [vmem:[%s1168] sm:$0xf]
        %v1171 = vsel %vm577, %v1167, 0
        %v1174 = vsel %vm912, %v1169, 0
        %1176 = vmatprep.subr.bf16.mxu0 0
        %1177 = vmatpush1.bf16.msra.mxu0 %v1174
        %1178 = vmatprep.subr.bf16.mxu0 0
        %1179 = vmatpush1.bf16.msra.mxu0 0
        %1180 = vmatprep.subr.bf16.mxu0 0
        %1181 = vmatpush1.bf16.msra.mxu0 0
        %1182 = vmatprep.subr.bf16.mxu0 0
        %1183 = vmatpush1.bf16.msra.mxu0 0
        %1184 = vmatprep.subr.bf16.mxu0 0
        %1185 = vmatpush1.bf16.msra.mxu0 0
        %1186 = vmatprep.subr.bf16.mxu0 0
        %1187 = vmatpush1.bf16.msra.mxu0 0
        %1188 = vmatprep.subr.bf16.mxu0 0
        %1189 = vmatpush1.bf16.msra.mxu0 0
        %1190 = vmatprep.subr.bf16.mxu0 0
        %1191 = vmatpush1.bf16.msra.mxu0 0
        %1192 = vmatprep.subr.bf16.mxu0 0
        %1193 = vmatpush1.bf16.msra.mxu0 0
        %1194 = vmatprep.subr.bf16.mxu0 0
        %1195 = vmatpush1.bf16.msra.mxu0 0
        %1196 = vmatprep.subr.bf16.mxu0 0
        %1197 = vmatpush1.bf16.msra.mxu0 0
        %1198 = vmatprep.subr.bf16.mxu0 0
        %1199 = vmatpush1.bf16.msra.mxu0 0
        %1200 = vmatprep.subr.bf16.mxu0 0
        %1201 = vmatpush1.bf16.msra.mxu0 0
        %1202 = vmatprep.subr.bf16.mxu0 0
        %1203 = vmatpush1.bf16.msra.mxu0 0
        %1204 = vmatprep.subr.bf16.mxu0 0
        %1205 = vmatpush1.bf16.msra.mxu0 0
        %1206 = vmatprep.subr.bf16.mxu0 0
        %1207 = vmatpush1.bf16.msra.mxu0 0
        %1208 = vmatprep.mubr.bf16.mxu0 0
        %1209 = vmatmul.mubr.bf16.gmra.mrb[0].mxu0 %v1171
        %v1210 = vpop.f32.mrb[0].mxu0
        %v1211 = vadd.f32 0.0, %v1210
        %v1212 = vpop.f32.mrb[0].mxu0
        %v1213 = vpop.f32.mrb[0].mxu0
        %v1214 = vpop.f32.mrb[0].mxu0
        %1215 = vdwg.mxu0
        %v1216 = vadd.f32 %v997, %v1211
        %1217 = vrot.lane.b32.xlu0 %v569, 104
        %v1218 = vpop.permute.xlu0 %1217
        %1219 = vrot.lane.b32.xlu0 %v569, 72
        %v1220 = vpop.permute.xlu0 %1219
        %v1221 = vsel %vm577, %v1218, 0
        %v1223 = vsel %vm577, %v1220, 0
        %1225 = vmatprep.subr.mxu0 0.0
        %1226 = vmatpush1.xpose.msra.mxu0 %v1223
        %1227 = vmatprep.subr.mxu0 0.0
        %1228 = vmatpush1.xpose.msra.mxu0 0.0
        %1229 = vmatprep.subr.mxu0 0.0
        %1230 = vmatpush1.xpose.msra.mxu0 0.0
        %1231 = vmatprep.subr.mxu0 0.0
        %1232 = vmatpush1.xpose.msra.mxu0 0.0
        %1233 = vmatprep.subr.mxu0 0.0
        %1234 = vmatpush1.xpose.msra.mxu0 0.0
        %1235 = vmatprep.subr.mxu0 0.0
        %1236 = vmatpush1.xpose.msra.mxu0 0.0
        %1237 = vmatprep.subr.mxu0 0.0
        %1238 = vmatpush1.xpose.msra.mxu0 0.0
        %1239 = vmatprep.subr.mxu0 0.0
        %1240 = vmatpush1.xpose.msra.mxu0 0.0
        %1241 = vmatprep.subr.mxu0 0.0
        %1242 = vmatpush1.xpose.msra.mxu0 0.0
        %1243 = vmatprep.subr.mxu0 0.0
        %1244 = vmatpush1.xpose.msra.mxu0 0.0
        %1245 = vmatprep.subr.mxu0 0.0
        %1246 = vmatpush1.xpose.msra.mxu0 0.0
        %1247 = vmatprep.subr.mxu0 0.0
        %1248 = vmatpush1.xpose.msra.mxu0 0.0
        %1249 = vmatprep.subr.mxu0 0.0
        %1250 = vmatpush1.xpose.msra.mxu0 0.0
        %1251 = vmatprep.subr.mxu0 0.0
        %1252 = vmatpush1.xpose.msra.mxu0 0.0
        %1253 = vmatprep.subr.mxu0 0.0
        %1254 = vmatpush1.xpose.msra.mxu0 0.0
        %1255 = vmatprep.subr.mxu0 0.0
        %1256 = vmatpush1.xpose.msra.mxu0 0.0
        %1257 = vmatprep.subr.mxu0 0.0
        %1258 = vmatpush1.xpose.msra.mxu0 0.0
        %1259 = vmatprep.subr.mxu0 0.0
        %1260 = vmatpush1.xpose.msra.mxu0 0.0
        %1261 = vmatprep.subr.mxu0 0.0
        %1262 = vmatpush1.xpose.msra.mxu0 0.0
        %1263 = vmatprep.subr.mxu0 0.0
        %1264 = vmatpush1.xpose.msra.mxu0 0.0
        %1265 = vmatprep.subr.mxu0 0.0
        %1266 = vmatpush1.xpose.msra.mxu0 0.0
        %1267 = vmatprep.subr.mxu0 0.0
        %1268 = vmatpush1.xpose.msra.mxu0 0.0
        %1269 = vmatprep.subr.mxu0 0.0
        %1270 = vmatpush1.xpose.msra.mxu0 0.0
        %1271 = vmatprep.subr.mxu0 0.0
        %1272 = vmatpush1.xpose.msra.mxu0 0.0
        %1273 = vmatprep.subr.mxu0 0.0
        %1274 = vmatpush1.xpose.msra.mxu0 0.0
        %1275 = vmatprep.subr.mxu0 0.0
        %1276 = vmatpush1.xpose.msra.mxu0 0.0
        %1277 = vmatprep.subr.mxu0 0.0
        %1278 = vmatpush1.xpose.msra.mxu0 0.0
        %1279 = vmatprep.subr.mxu0 0.0
        %1280 = vmatpush1.xpose.msra.mxu0 0.0
        %1281 = vmatprep.subr.mxu0 0.0
        %1282 = vmatpush1.xpose.msra.mxu0 0.0
        %1283 = vmatprep.subr.mxu0 0.0
        %1284 = vmatpush1.xpose.msra.mxu0 0.0
        %1285 = vmatprep.subr.mxu0 0.0
        %1286 = vmatpush1.xpose.msra.mxu0 0.0
        %1287 = vmatprep.subr.mxu0 0.0
        %1288 = vmatpush1.xpose.msra.mxu0 0.0
        %1289 = vmatprep.mubr.f32.mxu0 0.0
        %1290 = vmatmul.mubr.f32.gmra.mrb[0].mxu0 %v1221
        %v1291 = vpop.f32.mrb[0].mxu0
        %v1292 = vadd.f32 0.0, %v1291
        %v1293 = vpop.f32.mrb[0].mxu0
        %1294 = vdwg.mxu0
        %v1295 = vsel %vm577, %v1292, -inf
        %1296 = vmax.xlane.f32.xlu0 %v1295
        %v1297 = vpop.xlane.xlu0 %1296
        %v1298 = vsub.f32 %v1292, %v1297
        %v1299 = vmul.f32 %v1298, 1.442695
        %v1300 = vpow.pop %v1299
        %v1301 = vsel %vm577, %v1300, 0.0
        %1302 = vadd.xlane.f32.xlu0 %v1301
        %v1303 = vpop.xlane.xlu0 %1302
        %v1304 = vrcp.pop %v1303
        %v1305 = vmul.f32 %v1300, %v1304
        %1306 = vrot.lane.b32.xlu0 %v569, 40
        %v1307 = vpop.permute.xlu0 %1306
        %v1310 = vsel %vm577, %v1305, 0
        %1312 = vmatprep.subr.mxu0 0.0
        %1313 = vmatpush1.msra.mxu0 %v1307
        %1314 = vmatprep.subr.mxu0 0.0
        %1315 = vmatpush1.msra.mxu0 0.0
        %1316 = vmatprep.subr.mxu0 0.0
        %1317 = vmatpush1.msra.mxu0 0.0
        %1318 = vmatprep.subr.mxu0 0.0
        %1319 = vmatpush1.msra.mxu0 0.0
        %1320 = vmatprep.subr.mxu0 0.0
        %1321 = vmatpush1.msra.mxu0 0.0
        %1322 = vmatprep.subr.mxu0 0.0
        %1323 = vmatpush1.msra.mxu0 0.0
        %1324 = vmatprep.subr.mxu0 0.0
        %1325 = vmatpush1.msra.mxu0 0.0
        %1326 = vmatprep.subr.mxu0 0.0
        %1327 = vmatpush1.msra.mxu0 0.0
        %1328 = vmatprep.subr.mxu0 0.0
        %1329 = vmatpush1.msra.mxu0 0.0
        %1330 = vmatprep.subr.mxu0 0.0
        %1331 = vmatpush1.msra.mxu0 0.0
        %1332 = vmatprep.subr.mxu0 0.0
        %1333 = vmatpush1.msra.mxu0 0.0
        %1334 = vmatprep.subr.mxu0 0.0
        %1335 = vmatpush1.msra.mxu0 0.0
        %1336 = vmatprep.subr.mxu0 0.0
        %1337 = vmatpush1.msra.mxu0 0.0
        %1338 = vmatprep.subr.mxu0 0.0
        %1339 = vmatpush1.msra.mxu0 0.0
        %1340 = vmatprep.subr.mxu0 0.0
        %1341 = vmatpush1.msra.mxu0 0.0
        %1342 = vmatprep.subr.mxu0 0.0
        %1343 = vmatpush1.msra.mxu0 0.0
        %1344 = vmatprep.subr.mxu0 0.0
        %1345 = vmatpush1.msra.mxu0 0.0
        %1346 = vmatprep.subr.mxu0 0.0
        %1347 = vmatpush1.msra.mxu0 0.0
        %1348 = vmatprep.subr.mxu0 0.0
        %1349 = vmatpush1.msra.mxu0 0.0
        %1350 = vmatprep.subr.mxu0 0.0
        %1351 = vmatpush1.msra.mxu0 0.0
        %1352 = vmatprep.subr.mxu0 0.0
        %1353 = vmatpush1.msra.mxu0 0.0
        %1354 = vmatprep.subr.mxu0 0.0
        %1355 = vmatpush1.msra.mxu0 0.0
        %1356 = vmatprep.subr.mxu0 0.0
        %1357 = vmatpush1.msra.mxu0 0.0
        %1358 = vmatprep.subr.mxu0 0.0
        %1359 = vmatpush1.msra.mxu0 0.0
        %1360 = vmatprep.subr.mxu0 0.0
        %1361 = vmatpush1.msra.mxu0 0.0
        %1362 = vmatprep.subr.mxu0 0.0
        %1363 = vmatpush1.msra.mxu0 0.0
        %1364 = vmatprep.subr.mxu0 0.0
        %1365 = vmatpush1.msra.mxu0 0.0
        %1366 = vmatprep.subr.mxu0 0.0
        %1367 = vmatpush1.msra.mxu0 0.0
        %1368 = vmatprep.subr.mxu0 0.0
        %1369 = vmatpush1.msra.mxu0 0.0
        %1370 = vmatprep.subr.mxu0 0.0
        %1371 = vmatpush1.msra.mxu0 0.0
        %1372 = vmatprep.subr.mxu0 0.0
        %1373 = vmatpush1.msra.mxu0 0.0
        %1374 = vmatprep.subr.mxu0 0.0
        %1375 = vmatpush1.msra.mxu0 0.0
        %1376 = vmatprep.mubr.f32.mxu0 0.0
        %1377 = vmatmul.mubr.f32.gmra.mrb[0].mxu0 %v1310
        %v1378 = vpop.f32.mrb[0].mxu0
        %v1379 = vadd.f32 0.0, %v1378
        %v1380 = vpop.f32.mrb[0].mxu0
        %1381 = vdwg.mxu0
        %v1382 = vpack.c.bf16 %v1379, %v1379
        %s1383 = scalar_lea.vmem %s3, 12
        %v1384 = vld [vmem:[%s1383] sm:$0xf]
        %v1386 = vsel %vm577, %v1382, 0
        %v1389 = vsel %vm912, %v1384, 0
        %1391 = vmatprep.subr.bf16.mxu0 0
        %1392 = vmatpush1.bf16.msra.mxu0 %v1389
        %1393 = vmatprep.subr.bf16.mxu0 0
        %1394 = vmatpush1.bf16.msra.mxu0 0
        %1395 = vmatprep.subr.bf16.mxu0 0
        %1396 = vmatpush1.bf16.msra.mxu0 0
        %1397 = vmatprep.subr.bf16.mxu0 0
        %1398 = vmatpush1.bf16.msra.mxu0 0
        %1399 = vmatprep.subr.bf16.mxu0 0
        %1400 = vmatpush1.bf16.msra.mxu0 0
        %1401 = vmatprep.subr.bf16.mxu0 0
        %1402 = vmatpush1.bf16.msra.mxu0 0
        %1403 = vmatprep.subr.bf16.mxu0 0
        %1404 = vmatpush1.bf16.msra.mxu0 0
        %1405 = vmatprep.subr.bf16.mxu0 0
        %1406 = vmatpush1.bf16.msra.mxu0 0
        %1407 = vmatprep.subr.bf16.mxu0 0
        %1408 = vmatpush1.bf16.msra.mxu0 0
        %1409 = vmatprep.subr.bf16.mxu0 0
        %1410 = vmatpush1.bf16.msra.mxu0 0
        %1411 = vmatprep.subr.bf16.mxu0 0
        %1412 = vmatpush1.bf16.msra.mxu0 0
        %1413 = vmatprep.subr.bf16.mxu0 0
        %1414 = vmatpush1.bf16.msra.mxu0 0
        %1415 = vmatprep.subr.bf16.mxu0 0
        %1416 = vmatpush1.bf16.msra.mxu0 0
        %1417 = vmatprep.subr.bf16.mxu0 0
        %1418 = vmatpush1.bf16.msra.mxu0 0
        %1419 = vmatprep.subr.bf16.mxu0 0
        %1420 = vmatpush1.bf16.msra.mxu0 0
        %1421 = vmatprep.subr.bf16.mxu0 0
        %1422 = vmatpush1.bf16.msra.mxu0 0
        %1423 = vmatprep.mubr.bf16.mxu0 0
        %1424 = vmatmul.mubr.bf16.gmra.mrb[0].mxu0 %v1386
        %v1425 = vpop.f32.mrb[0].mxu0
        %v1426 = vadd.f32 0.0, %v1425
        %v1427 = vpop.f32.mrb[0].mxu0
        %v1428 = vpop.f32.mrb[0].mxu0
        %v1429 = vpop.f32.mrb[0].mxu0
        %1430 = vdwg.mxu0
        %v1431 = vadd.f32 %v1216, %v1426
        %v1432 = vlaneseq
        %v1433 = vshrl.u32 %v1432, 7
        %v1434 = vsub.s32 0, %v1433
        %v1435 = vrot.slane %v441, %v1434
        %v1436 = vadd.f32 %v1431, %v1435
        %v1437 = vadd.f32 %v501, %v1436
        %v1438 = vsel %vm530, %v1437, 0.0
        %1439 = vadd.xlane.f32.xlu0 %v1438
        %v1440 = vpop.xlane.xlu0 %1439
        %v1441 = vrcp.pop 32.0
        %v1442 = vmul.f32 %v1440, %v1441
        %v1443 = vsub.f32 %v1437, %v1442
        %v1444 = vmul.f32 %v1443, %v1443
        %v1445 = vsel %vm530, %v1444, 0.0
        %1446 = vadd.xlane.f32.xlu0 %v1445
        %v1447 = vpop.xlane.xlu0 %1446
        %v1448 = vmul.f32 %v1447, %v1441
        %v1449 = vadd.f32 %v1448, 1e-05
        %v1450 = vrsqrt.pop %v1449
        %v1451 = vmul.f32 %v1443, %v1450
        %v1452 = vlaneseq
        %v1453 = vshrl.u32 %v1452, 7
        %v1454 = vsub.s32 0, %v1453
        %v1455 = vrot.slane %v442, %v1454
        %v1456 = vmul.f32 %v1451, %v1455
        %v1457 = vlaneseq
        %v1458 = vshrl.u32 %v1457, 7
        %v1459 = vsub.s32 0, %v1458
        %v1460 = vrot.slane %v443, %v1459
        %v1461 = vadd.f32 %v1456, %v1460
        %v1462 = vpack.c.bf16 %v1461, %v1461
        %v1463 = vld [vmem:[%s4] sm:$0xf]
        %v1464 = vld [vmem:[%s4 + $0x4] sm:$0xf]
        %v1465 = vld [vmem:[%s4 + $0x8] sm:$0xf]
        %v1466 = vld [vmem:[%s4 + $0xc] sm:$0xf]
        %v1467 = vld [vmem:[%s10] sm:$0x1]
        %v1469 = vlaneseq
        %v1470 = vshrl.u32 %v1469, 7
        %v1471 = vsub.s32 0, %v1470
        %v1472 = vrot.slane %v1467, %v1471
        %v1478 = vunpack.c.l.b16 %v1463
        %v1479 = vunpack.c.l.b16 %v1464
        %v1480 = vunpack.c.l.b16 %v1465
        %v1481 = vunpack.c.l.b16 %v1466
        %v1482 = vpack.c.b16 %v1479, %v1478
        %v1483 = vpack.c.b16 %v1481, %v1480
        %v1487 = vsel %vm530, %v1462, 0
        %1489 = vmatprep.subr.bf16.mxu0 0
        %1490 = vmatpush1.bf16.msra.mxu0 %v1482
        %1491 = vmatprep.subr.bf16.mxu0 0
        %1492 = vmatpush1.bf16.msra.mxu0 %v1483
        %1493 = vmatprep.subr.bf16.mxu0 0
        %1494 = vmatpush1.bf16.msra.mxu0 0
        %1495 = vmatprep.subr.bf16.mxu0 0
        %1496 = vmatpush1.bf16.msra.mxu0 0
        %1497 = vmatprep.subr.bf16.mxu0 0
        %1498 = vmatpush1.bf16.msra.mxu0 0
        %1499 = vmatprep.subr.bf16.mxu0 0
        %1500 = vmatpush1.bf16.msra.mxu0 0
        %1501 = vmatprep.subr.bf16.mxu0 0
        %1502 = vmatpush1.bf16.msra.mxu0 0
        %1503 = vmatprep.subr.bf16.mxu0 0
        %1504 = vmatpush1.bf16.msra.mxu0 0
        %1505 = vmatprep.subr.bf16.mxu0 0
        %1506 = vmatpush1.bf16.msra.mxu0 0
        %1507 = vmatprep.subr.bf16.mxu0 0
        %1508 = vmatpush1.bf16.msra.mxu0 0
        %1509 = vmatprep.subr.bf16.mxu0 0
        %1510 = vmatpush1.bf16.msra.mxu0 0
        %1511 = vmatprep.subr.bf16.mxu0 0
        %1512 = vmatpush1.bf16.msra.mxu0 0
        %1513 = vmatprep.subr.bf16.mxu0 0
        %1514 = vmatpush1.bf16.msra.mxu0 0
        %1515 = vmatprep.subr.bf16.mxu0 0
        %1516 = vmatpush1.bf16.msra.mxu0 0
        %1517 = vmatprep.subr.bf16.mxu0 0
        %1518 = vmatpush1.bf16.msra.mxu0 0
        %1519 = vmatprep.subr.bf16.mxu0 0
        %1520 = vmatpush1.bf16.msra.mxu0 0
        %1521 = vmatprep.mubr.bf16.mxu0 0
        %1522 = vmatmul.mubr.bf16.gmra.mrb[0].mxu0 %v1487
        %v1523 = vpop.f32.mrb[0].mxu0
        %v1524 = vadd.f32 %v1472, %v1523
        %v1525 = vpop.f32.mrb[0].mxu0
        %v1526 = vpop.f32.mrb[0].mxu0
        %v1527 = vpop.f32.mrb[0].mxu0
        %1528 = vdwg.mxu0
        %v1529 = vmax.f32 %v1524, 0.0
        %v1530 = vpack.c.bf16 %v1529, %v1529
        %v1531 = vld [vmem:[%s5] sm:$0xf]
        %v1532 = vld [vmem:[%s5 + $0x4] sm:$0xf]
        %v1533 = vld [vmem:[%s5 + $0x8] sm:$0xf]
        %v1534 = vld [vmem:[%s5 + $0xc] sm:$0xf]
        %v1535 = vld [vmem:[%s5 + $0x10] sm:$0xf]
        %v1536 = vld [vmem:[%s5 + $0x14] sm:$0xf]
        %v1537 = vld [vmem:[%s5 + $0x18] sm:$0xf]
        %v1538 = vld [vmem:[%s5 + $0x1c] sm:$0xf]
        %v1539 = vld [vmem:[%s5 + $0x20] sm:$0xf]
        %v1540 = vld [vmem:[%s5 + $0x24] sm:$0xf]
        %v1541 = vld [vmem:[%s5 + $0x28] sm:$0xf]
        %v1542 = vld [vmem:[%s5 + $0x2c] sm:$0xf]
        %v1543 = vld [vmem:[%s5 + $0x30] sm:$0xf]
        %v1544 = vld [vmem:[%s5 + $0x34] sm:$0xf]
        %v1545 = vld [vmem:[%s5 + $0x38] sm:$0xf]
        %v1546 = vld [vmem:[%s5 + $0x3c] sm:$0xf]
        %v1547 = vlaneseq
        %v1548 = vshrl.u32 %v1547, 7
        %v1549 = vsub.s32 0, %v1548
        %v1550 = vrot.slane %v444, %v1549
        %v1567 = vunpack.c.l.b16 %v1531
        %v1568 = vunpack.c.l.b16 %v1532
        %v1569 = vunpack.c.l.b16 %v1533
        %v1570 = vunpack.c.l.b16 %v1534
        %v1571 = vunpack.c.l.b16 %v1535
        %v1572 = vunpack.c.l.b16 %v1536
        %v1573 = vunpack.c.l.b16 %v1537
        %v1574 = vunpack.c.l.b16 %v1538
        %v1575 = vunpack.c.l.b16 %v1539
        %v1576 = vunpack.c.l.b16 %v1540
        %v1577 = vunpack.c.l.b16 %v1541
        %v1578 = vunpack.c.l.b16 %v1542
        %v1579 = vunpack.c.l.b16 %v1543
        %v1580 = vunpack.c.l.b16 %v1544
        %v1581 = vunpack.c.l.b16 %v1545
        %v1582 = vunpack.c.l.b16 %v1546
        %v1583 = vpack.c.b16 %v1568, %v1567
        %v1584 = vpack.c.b16 %v1570, %v1569
        %v1585 = vpack.c.b16 %v1572, %v1571
        %v1586 = vpack.c.b16 %v1574, %v1573
        %v1587 = vpack.c.b16 %v1576, %v1575
        %v1588 = vpack.c.b16 %v1578, %v1577
        %v1589 = vpack.c.b16 %v1580, %v1579
        %v1590 = vpack.c.b16 %v1582, %v1581
        %1599 = vmatprep.subr.bf16.mxu0 0
        %1600 = vmatpush1.bf16.msra.mxu0 %v1583
        %1601 = vmatprep.subr.bf16.mxu0 0
        %1602 = vmatpush1.bf16.msra.mxu0 %v1584
        %1603 = vmatprep.subr.bf16.mxu0 0
        %1604 = vmatpush1.bf16.msra.mxu0 %v1585
        %1605 = vmatprep.subr.bf16.mxu0 0
        %1606 = vmatpush1.bf16.msra.mxu0 %v1586
        %1607 = vmatprep.subr.bf16.mxu0 0
        %1608 = vmatpush1.bf16.msra.mxu0 %v1587
        %1609 = vmatprep.subr.bf16.mxu0 0
        %1610 = vmatpush1.bf16.msra.mxu0 %v1588
        %1611 = vmatprep.subr.bf16.mxu0 0
        %1612 = vmatpush1.bf16.msra.mxu0 %v1589
        %1613 = vmatprep.subr.bf16.mxu0 0
        %1614 = vmatpush1.bf16.msra.mxu0 %v1590
        %1615 = vmatprep.subr.bf16.mxu0 0
        %1616 = vmatpush1.bf16.msra.mxu0 0
        %1617 = vmatprep.subr.bf16.mxu0 0
        %1618 = vmatpush1.bf16.msra.mxu0 0
        %1619 = vmatprep.subr.bf16.mxu0 0
        %1620 = vmatpush1.bf16.msra.mxu0 0
        %1621 = vmatprep.subr.bf16.mxu0 0
        %1622 = vmatpush1.bf16.msra.mxu0 0
        %1623 = vmatprep.subr.bf16.mxu0 0
        %1624 = vmatpush1.bf16.msra.mxu0 0
        %1625 = vmatprep.subr.bf16.mxu0 0
        %1626 = vmatpush1.bf16.msra.mxu0 0
        %1627 = vmatprep.subr.bf16.mxu0 0
        %1628 = vmatpush1.bf16.msra.mxu0 0
        %1629 = vmatprep.subr.bf16.mxu0 0
        %1630 = vmatpush1.bf16.msra.mxu0 0
        %1631 = vmatprep.mubr.bf16.mxu0 0
        %1632 = vmatmul.mubr.bf16.gmra.mrb[0].mxu0 %v1530
        %v1633 = vpop.f32.mrb[0].mxu0
        %v1634 = vadd.f32 %v1550, %v1633
        %v1635 = vpop.f32.mrb[0].mxu0
        %v1636 = vpop.f32.mrb[0].mxu0
        %v1637 = vpop.f32.mrb[0].mxu0
        %1638 = vdwg.mxu0
        %v1639 = vadd.f32 %v1461, %v1634
        %v1640 = vsel %vm530, %v1639, 0.0
        %1641 = vadd.xlane.f32.xlu0 %v1640
        %v1642 = vpop.xlane.xlu0 %1641
        %v1643 = vmul.f32 %v1642, %v1441
        %v1644 = vsub.f32 %v1639, %v1643
        %v1645 = vmul.f32 %v1644, %v1644
        %v1646 = vsel %vm530, %v1645, 0.0
        %1647 = vadd.xlane.f32.xlu0 %v1646
        %v1648 = vpop.xlane.xlu0 %1647
        %v1649 = vmul.f32 %v1648, %v1441
        %v1650 = vadd.f32 %v1649, 1e-05
        %v1651 = vrsqrt.pop %v1650
        %v1652 = vmul.f32 %v1644, %v1651
        %v1653 = vlaneseq
        %v1654 = vshrl.u32 %v1653, 7
        %v1655 = vsub.s32 0, %v1654
        %v1656 = vrot.slane %v445, %v1655
        %v1657 = vmul.f32 %v1652, %v1656
        %v1658 = vlaneseq
        %v1659 = vshrl.u32 %v1658, 7
        %v1660 = vsub.s32 0, %v1659
        %v1661 = vrot.slane %v446, %v1660
        %v1662 = vadd.f32 %v1657, %v1661
        %v1663 = vpack.c.bf16 %v1662, %v1662
        %v1664 = vld [vmem:[%s6] sm:$0xf]
        %v1665 = vld [vmem:[%s6 + $0x4] sm:$0xf]
        %v1666 = vld [vmem:[%s6 + $0x8] sm:$0xf]
        %v1667 = vld [vmem:[%s6 + $0xc] sm:$0xf]
        %v1668 = vlaneseq
        %v1669 = vshrl.u32 %v1668, 7
        %v1670 = vsub.s32 0, %v1669
        %v1671 = vrot.slane %v447, %v1670
        %v1676 = vunpack.c.l.b16 %v1664
        %v1677 = vunpack.c.l.b16 %v1665
        %v1678 = vunpack.c.l.b16 %v1666
        %v1679 = vunpack.c.l.b16 %v1667
        %v1680 = vpack.c.b16 %v1677, %v1676
        %v1681 = vpack.c.b16 %v1679, %v1678
        %v1685 = vsel %vm530, %v1663, 0
        %1687 = vmatprep.subr.bf16.mxu0 0
        %1688 = vmatpush1.bf16.msra.mxu0 %v1680
        %1689 = vmatprep.subr.bf16.mxu0 0
        %1690 = vmatpush1.bf16.msra.mxu0 %v1681
        %1691 = vmatprep.subr.bf16.mxu0 0
        %1692 = vmatpush1.bf16.msra.mxu0 0
        %1693 = vmatprep.subr.bf16.mxu0 0
        %1694 = vmatpush1.bf16.msra.mxu0 0
        %1695 = vmatprep.subr.bf16.mxu0 0
        %1696 = vmatpush1.bf16.msra.mxu0 0
        %1697 = vmatprep.subr.bf16.mxu0 0
        %1698 = vmatpush1.bf16.msra.mxu0 0
        %1699 = vmatprep.subr.bf16.mxu0 0
        %1700 = vmatpush1.bf16.msra.mxu0 0
        %1701 = vmatprep.subr.bf16.mxu0 0
        %1702 = vmatpush1.bf16.msra.mxu0 0
        %1703 = vmatprep.subr.bf16.mxu0 0
        %1704 = vmatpush1.bf16.msra.mxu0 0
        %1705 = vmatprep.subr.bf16.mxu0 0
        %1706 = vmatpush1.bf16.msra.mxu0 0
        %1707 = vmatprep.subr.bf16.mxu0 0
        %1708 = vmatpush1.bf16.msra.mxu0 0
        %1709 = vmatprep.subr.bf16.mxu0 0
        %1710 = vmatpush1.bf16.msra.mxu0 0
        %1711 = vmatprep.subr.bf16.mxu0 0
        %1712 = vmatpush1.bf16.msra.mxu0 0
        %1713 = vmatprep.subr.bf16.mxu0 0
        %1714 = vmatpush1.bf16.msra.mxu0 0
        %1715 = vmatprep.subr.bf16.mxu0 0
        %1716 = vmatpush1.bf16.msra.mxu0 0
        %1717 = vmatprep.subr.bf16.mxu0 0
        %1718 = vmatpush1.bf16.msra.mxu0 0
        %1719 = vmatprep.mubr.bf16.mxu0 0
        %1720 = vmatmul.mubr.bf16.gmra.mrb[0].mxu0 %v1685
        %v1721 = vpop.f32.mrb[0].mxu0
        %v1722 = vadd.f32 %v1671, %v1721
        %v1723 = vpop.f32.mrb[0].mxu0
        %v1724 = vpop.f32.mrb[0].mxu0
        %v1725 = vpop.f32.mrb[0].mxu0
        %1726 = vdwg.mxu0
        %v1727 = vmax.f32 %v1722, 0.0
        %v1728 = vpack.c.bf16 %v1727, %v1727
        %v1729 = vld [vmem:[#allocation5] sm:$0xf]
        %v1730 = vld [vmem:[#allocation5 + $0x4] sm:$0xf]
        %v1731 = vld [vmem:[#allocation5 + $0x8] sm:$0xf]
        %v1732 = vld [vmem:[#allocation5 + $0xc] sm:$0xf]
        %v1733 = vld [vmem:[%s11] sm:$0x1]
        %v1735 = vlaneseq
        %v1736 = vshrl.u32 %v1735, 7
        %v1737 = vsub.s32 0, %v1736
        %v1738 = vrot.slane %v1733, %v1737
        %v1744 = vunpack.c.l.b16 %v1729
        %v1745 = vunpack.c.l.b16 %v1730
        %v1746 = vunpack.c.l.b16 %v1731
        %v1747 = vunpack.c.l.b16 %v1732
        %v1748 = vpack.c.b16 %v1745, %v1744
        %v1749 = vpack.c.b16 %v1747, %v1746
        %v1753 = vsel %vm530, %v1728, 0
        %1755 = vmatprep.subr.bf16.mxu0 0
        %1756 = vmatpush1.bf16.msra.mxu0 %v1748
        %1757 = vmatprep.subr.bf16.mxu0 0
        %1758 = vmatpush1.bf16.msra.mxu0 %v1749
        %1759 = vmatprep.subr.bf16.mxu0 0
        %1760 = vmatpush1.bf16.msra.mxu0 0
        %1761 = vmatprep.subr.bf16.mxu0 0
        %1762 = vmatpush1.bf16.msra.mxu0 0
        %1763 = vmatprep.subr.bf16.mxu0 0
        %1764 = vmatpush1.bf16.msra.mxu0 0
        %1765 = vmatprep.subr.bf16.mxu0 0
        %1766 = vmatpush1.bf16.msra.mxu0 0
        %1767 = vmatprep.subr.bf16.mxu0 0
        %1768 = vmatpush1.bf16.msra.mxu0 0
        %1769 = vmatprep.subr.bf16.mxu0 0
        %1770 = vmatpush1.bf16.msra.mxu0 0
        %1771 = vmatprep.subr.bf16.mxu0 0
        %1772 = vmatpush1.bf16.msra.mxu0 0
        %1773 = vmatprep.subr.bf16.mxu0 0
        %1774 = vmatpush1.bf16.msra.mxu0 0
        %1775 = vmatprep.subr.bf16.mxu0 0
        %1776 = vmatpush1.bf16.msra.mxu0 0
        %1777 = vmatprep.subr.bf16.mxu0 0
        %1778 = vmatpush1.bf16.msra.mxu0 0
        %1779 = vmatprep.subr.bf16.mxu0 0
        %1780 = vmatpush1.bf16.msra.mxu0 0
        %1781 = vmatprep.subr.bf16.mxu0 0
        %1782 = vmatpush1.bf16.msra.mxu0 0
        %1783 = vmatprep.subr.bf16.mxu0 0
        %1784 = vmatpush1.bf16.msra.mxu0 0
        %1785 = vmatprep.subr.bf16.mxu0 0
        %1786 = vmatpush1.bf16.msra.mxu0 0
        %1787 = vmatprep.mubr.bf16.mxu0 0
        %1788 = vmatmul.mubr.bf16.gmra.mrb[0].mxu0 %v1753
        %v1789 = vpop.f32.mrb[0].mxu0
        %v1790 = vadd.f32 %v1738, %v1789
        %v1791 = vpop.f32.mrb[0].mxu0
        %v1792 = vpop.f32.mrb[0].mxu0
        %v1793 = vpop.f32.mrb[0].mxu0
        %1794 = vdwg.mxu0
        %1795 = vst [vmem:[%s434] sm:$0xff] %v1790
        %s1796 = sand.u32 %s293, 1
        %s1797 = scalar_lea.sflag [#allocation4], %s1796
        %s1798 = sand.u32 %s293, 1
        %s1799 = smul.addr %s1798, 8
        %s1800 = scalar_lea.vmem [#allocation7], %s1799
        // Predicated region
        $region77: #{tpu_custom_call.1} parent=67 // pred_check
          %p1801 = pneg %p303
        $region78: #{tpu_custom_call.1} parent=67 // pred_check_branch
          %1803 = sbr.rel (%p1801) target = $region80
        $region79: #{tpu_custom_call.1} parent=67 // pred_region
          %s1805 = ssub.s32 128, 128
          %1806 = vsyncadd %s1797, %s1805
          %s1807 = smul.addr %s28, 128
          %s1808 = scalar_lea.hbm %s12, %s1807
          %s1810 = sshll.u32 %s1800, 4
          %s1811 = int_to_ptr.vmem [resolvable:$true] %s1810
          %1813 = dma.vmem_to_hbm [thread:$0]  %s1811, 128, %s1808, %s1797
        $region80: #{tpu_custom_call.1} parent=67 // pred_fallthru
          _
      $region68: #{tpu_custom_call.1} parent=5 // pred_fallthru
        _
      %p1814 = scmp.le.s32.totalorder 2, %s23
      // Predicated region
      $region81: #{tpu_custom_call.1} parent=5 // pred_check
        %p1815 = pneg %p1814
      $region82: #{tpu_custom_call.1} parent=5 // pred_check_branch
        %1817 = sbr.rel (%p1815) target = $region84
      $region83: #{tpu_custom_call.1} parent=5 // pred_region
        %s1818 = ssub.s32 %s23, 2
        // Predicated region
        $region85: #{tpu_custom_call.1} parent=83 // pred_check
          %p1819 = pneg %p309
        $region86: #{tpu_custom_call.1} parent=83 // pred_check_branch
          %1821 = sbr.rel (%p1819) target = $region88
        $region87: #{tpu_custom_call.1} parent=83 // pred_region
          %s1822 = sand.u32 %s294, 1
          %s1823 = scalar_lea.sflag [#allocation4], %s1822
          %s1824 = sand.u32 %s294, 1
          %s1825 = smul.addr %s1824, 8
          %s1826 = scalar_lea.vmem [#allocation7], %s1825
          %1827 = dma.done %s1823, 128
        $region88: #{tpu_custom_call.1} parent=83 // pred_fallthru
          _
      $region84: #{tpu_custom_call.1} parent=5 // pred_fallthru
        _
    $region6: #{tpu_custom_call.1} parent=1 // loop_footer
      %s27 = sadd.s32 1, %s23
    $region7: #{tpu_custom_call.1} parent=1 // loop_footer_branch
      %22 = sbr.rel target = $region3
    $region8: #{tpu_custom_call.1} parent=1 // loop_exit
      _
    %1828 = vsyncpa [#allocation3], 1
    %s1829 = scalar_lea.sflag [#allocation3], 1
    %1830 = vsyncpa %s1829, 1
    %1831 = vsyncpa [#allocation6], 1
    %1832 = vsyncpa [#allocation4], 1
    %s1833 = scalar_lea.sflag [#allocation4], 1
    %1834 = vsyncpa %s1833, 1

</llo_original>
